<compile_context>
chip_gen: v7x
topology: tpu7x:2x2x1
jax: 0.10.0
libtpu: 0.0.40
codegen_flags: <defaults>
</compile_context>

<pallas_src>
import jax
import jax.numpy as jnp
from jax.experimental import pallas as pl
from jax.experimental.pallas import tpu as pltpu

IN_FEATURES = 28 ** 2
NUM_CLASSES = 10
LANE = 128
NEG_INF = -1e30
MAX_TB = 1024      # largest batch tile (fits comfortably in 32 MiB scoped VMEM)
MIN_SPLIT = 512    # batches larger than this get >= 2 grid steps (v7x megacore)


def _round_up(n, m):
    return ((n + m - 1) // m) * m


def _choose_tb(B):
    """Pick the batch tile. Prefer: no batch padding, >=2 grid steps when big."""
    if B <= MIN_SPLIT:
        return _round_up(B, 8)                     # single tile, pads <= 7 rows
    # Prefer a multiple-of-8 tile that divides B exactly (no padded copy of x)
    # and yields >= 2 grid steps so both v7x TensorCores get work.
    hi = min(MAX_TB, (B // 2) // 8 * 8)
    for cand in range(hi, 255, -8):
        if B % cand == 0:
            return cand
    # No exact divisor: ~equal tiles (>= 2), pad the small remainder.
    n_tiles = max(2, -(-B // MAX_TB))
    return _round_up(-(-B // n_tiles), 8)


def _mlp_kernel(x_ref,
                w1_ref, b1_ref,
                w2_ref, b2_ref,
                w3_ref, b3_ref,
                w4_ref, b4_ref,
                w5_ref, b5_ref,
                out_ref):
    # x arrives as f32 (TB, 784); cast to bf16 in-VMEM for the MXU.
    # Weights are bf16; biases f32; accumulation / ReLU / softmax in f32.
    h = x_ref[...].astype(jnp.bfloat16)

    h = jnp.dot(h, w1_ref[...], preferred_element_type=jnp.float32) + b1_ref[...]
    h = jnp.maximum(h, 0.0).astype(jnp.bfloat16)

    h = jnp.dot(h, w2_ref[...], preferred_element_type=jnp.float32) + b2_ref[...]
    h = jnp.maximum(h, 0.0).astype(jnp.bfloat16)

    h = jnp.dot(h, w3_ref[...], preferred_element_type=jnp.float32) + b3_ref[...]
    h = jnp.maximum(h, 0.0).astype(jnp.bfloat16)

    # fc4 is lane-padded to 128 output columns (padded cols -> relu(0)=0).
    h = jnp.dot(h, w4_ref[...], preferred_element_type=jnp.float32) + b4_ref[...]
    h = jnp.maximum(h, 0.0).astype(jnp.bfloat16)

    # fc5 lane-padded to 128 logits; padded columns carry bias -1e30 so they
    # contribute exp(.)=0 to the softmax denominator and never win the max.
    logits = jnp.dot(h, w5_ref[...], preferred_element_type=jnp.float32) + b5_ref[...]

    # log_softmax over the (lane-dense, 128-wide) class dimension, in f32.
    m = jnp.max(logits, axis=-1, keepdims=True)
    shifted = logits - m
    lse = jnp.log(jnp.sum(jnp.exp(shifted), axis=-1, keepdims=True))
    out_ref[...] = (shifted - lse).astype(out_ref.dtype)


def _pad_cols(a, target, value=0.0):
    pad = target - a.shape[-1]
    if pad <= 0:
        return a
    return jnp.pad(a, ((0, 0), (0, pad)), constant_values=value)


def _pad_rows(a, target):
    pad = target - a.shape[0]
    if pad <= 0:
        return a
    return jnp.pad(a, ((0, pad), (0, 0)))


def _prepare_params(params):
    """Cast weights to bf16 and lane-pad the narrow fc4/fc5 layers (one-time)."""
    p = {}
    p["w1"] = params["w1"].astype(jnp.bfloat16)                       # (784, 512)
    p["b1"] = params["b1"].astype(jnp.float32)                        # (1, 512)
    p["w2"] = params["w2"].astype(jnp.bfloat16)                       # (512, 256)
    p["b2"] = params["b2"].astype(jnp.float32)                        # (1, 256)
    p["w3"] = params["w3"].astype(jnp.bfloat16)                       # (256, 128)
    p["b3"] = params["b3"].astype(jnp.float32)                        # (1, 128)
    p["w4"] = _pad_cols(params["w4"], LANE).astype(jnp.bfloat16)      # (128, 128)
    p["b4"] = _pad_cols(params["b4"].astype(jnp.float32), LANE, 0.0)  # (1, 128)
    w5 = _pad_rows(_pad_cols(params["w5"], LANE), LANE)               # (128, 128)
    p["w5"] = w5.astype(jnp.bfloat16)
    p["b5"] = _pad_cols(params["b5"].astype(jnp.float32), LANE, NEG_INF)  # (1, 128)
    return p


def fcnet_forward(x, params, *, tb=None):
    """Forward pass of FCNetMagnitudeMnistClasif.

    x: any shape that flattens to (B, 784) float32 (mirrors x.view(-1, 784)).
    params: dict of f32 weights (in, out) and biases (1, out).
    Returns (B, 10) f32 log-probabilities.
    """
    x = x.reshape(-1, IN_FEATURES).astype(jnp.float32)
    B, F = x.shape

    if tb is None:
        tb = _choose_tb(B)
    Bp = _round_up(B, tb)

    if Bp != B:
        # Only taken when no divisor tile exists / tiny batches; pads few rows.
        x = jnp.pad(x, ((0, Bp - B), (0, 0)))

    p = _prepare_params(params)

    args = [x]
    in_specs = [pl.BlockSpec((tb, F), lambda i: (i, 0))]
    for k in range(1, 6):
        w = p[f"w{k}"]
        b = p[f"b{k}"]
        args += [w, b]
        # Weights/biases stay VMEM-resident: constant block index across the grid.
        in_specs.append(pl.BlockSpec(w.shape, lambda i: (0, 0)))
        in_specs.append(pl.BlockSpec(b.shape, lambda i: (0, 0)))

    out = pl.pallas_call(
        _mlp_kernel,
        out_shape=jax.ShapeDtypeStruct((Bp, LANE), jnp.bfloat16),
        grid_spec=pltpu.PrefetchScalarGridSpec(
            num_scalar_prefetch=0,
            grid=(Bp // tb,),
            in_specs=in_specs,
            out_specs=pl.BlockSpec((tb, LANE), lambda i: (i, 0)),
        ),
        compiler_params=pltpu.CompilerParams(
            dimension_semantics=("parallel",),
            vmem_limit_bytes=32 << 20,
        ),
    )(*args)

    # Lane-dense bf16 slab -> the 10 real classes, back to f32 (module dtype).
    return out[:B, :NUM_CLASSES].astype(jnp.float32)


def init_params(key, in_channels=IN_FEATURES):
    dims = [in_channels, 512, 256, 128, 64, 10]
    params = {}
    for i in range(5):
        fan_in, fan_out = dims[i], dims[i + 1]
        key, kw, kb = jax.random.split(key, 3)
        bound = 1.0 / jnp.sqrt(jnp.float32(fan_in))  # nn.Linear default init range
        params[f"w{i + 1}"] = jax.random.uniform(
            kw, (fan_in, fan_out), jnp.float32, -bound, bound)
        params[f"b{i + 1}"] = jax.random.uniform(
            kb, (1, fan_out), jnp.float32, -bound, bound)
    return params


def reference_forward(x, params):
    """Pure-JAX reference with the same numerics (bf16 matmul inputs, f32 acc)."""
    h = x.reshape(-1, IN_FEATURES).astype(jnp.bfloat16)
    for i in range(1, 5):
        h = jnp.dot(h, params[f"w{i}"].astype(jnp.bfloat16),
                    preferred_element_type=jnp.float32) + params[f"b{i}"]
        h = jnp.maximum(h, 0.0).astype(jnp.bfloat16)
    logits = jnp.dot(h, params["w5"].astype(jnp.bfloat16),
                     preferred_element_type=jnp.float32) + params["b5"]
    return jax.nn.log_softmax(logits, axis=-1)


if __name__ == "__main__":
    key = jax.random.PRNGKey(0)
    kx, kx2, kx3, kp = jax.random.split(key, 4)

    params = init_params(kp, IN_FEATURES)

    # Small test: image-shaped input, module's view(-1, 784) done in the wrapper.
    B = 8
    x = jax.random.normal(kx, (B, 1, 28, 28), jnp.float32)
    out = jax.block_until_ready(fcnet_forward(x, params))
    ref = reference_forward(x, params)
    assert out.shape == (B, NUM_CLASSES)
    assert bool(jnp.all(jnp.isfinite(out)))
    assert jnp.allclose(out, ref, atol=2e-2, rtol=2e-2), "mismatch vs reference (B=8)"

    # Exercises the batch-padding path (B not a multiple of 8, single tile).
    B2 = 300
    x2 = jax.random.normal(kx2, (B2, IN_FEATURES), jnp.float32)
    out2 = jax.block_until_ready(fcnet_forward(x2, params))
    ref2 = reference_forward(x2, params)
    assert out2.shape == (B2, NUM_CLASSES)
    assert jnp.allclose(out2, ref2, atol=2e-2, rtol=2e-2), "mismatch vs reference (B=300)"

    # Exercises the multi-step grid (divisor tile, no padding, grid=2).
    B3 = 1024
    x3 = jax.random.normal(kx3, (B3, IN_FEATURES), jnp.float32)
    out3 = jax.block_until_ready(fcnet_forward(x3, params))
    ref3 = reference_forward(x3, params)
    assert out3.shape == (B3, NUM_CLASSES)
    assert jnp.allclose(out3, ref3, atol=2e-2, rtol=2e-2), "mismatch vs reference (B=1024)"

    print("KERNEL_OK")
</pallas_src>

<mosaic_0001>
module attributes {stable_mosaic.version = 11 : i64} {
  func.func @_mlp_kernel(%arg0: i32, %arg1: memref<8x784xf32, #tpu.memory_space<vmem>>, %arg2: memref<784x512xbf16, #tpu.memory_space<vmem>>, %arg3: memref<1x512xf32, #tpu.memory_space<vmem>>, %arg4: memref<512x256xbf16, #tpu.memory_space<vmem>>, %arg5: memref<1x256xf32, #tpu.memory_space<vmem>>, %arg6: memref<256x128xbf16, #tpu.memory_space<vmem>>, %arg7: memref<1x128xf32, #tpu.memory_space<vmem>>, %arg8: memref<128x128xbf16, #tpu.memory_space<vmem>>, %arg9: memref<1x128xf32, #tpu.memory_space<vmem>>, %arg10: memref<128x128xbf16, #tpu.memory_space<vmem>>, %arg11: memref<1x128xf32, #tpu.memory_space<vmem>>, %arg12: memref<8x128xbf16, #tpu.memory_space<vmem>>) attributes {dimension_semantics = [#tpu.dimension_semantics<parallel>], iteration_bounds = array<i64: 1>, scalar_prefetch = 0 : i64, scratch_operands = 0 : i64, tpu.core_type = #tpu.core_type<tc>, window_params = [{transform_indices = @transform_0, window_bounds = array<i64: 8, 784>}, {pipeline_mode = #tpu.pipeline_mode<synchronous>, transform_indices = @transform_1, window_bounds = array<i64: 784, 512>}, {pipeline_mode = #tpu.pipeline_mode<synchronous>, transform_indices = @transform_2, window_bounds = array<i64: 1, 512>}, {pipeline_mode = #tpu.pipeline_mode<synchronous>, transform_indices = @transform_3, window_bounds = array<i64: 512, 256>}, {pipeline_mode = #tpu.pipeline_mode<synchronous>, transform_indices = @transform_4, window_bounds = array<i64: 1, 256>}, {pipeline_mode = #tpu.pipeline_mode<synchronous>, transform_indices = @transform_5, window_bounds = array<i64: 256, 128>}, {pipeline_mode = #tpu.pipeline_mode<synchronous>, transform_indices = @transform_6, window_bounds = array<i64: 1, 128>}, {pipeline_mode = #tpu.pipeline_mode<synchronous>, transform_indices = @transform_7, window_bounds = array<i64: 128, 128>}, {pipeline_mode = #tpu.pipeline_mode<synchronous>, transform_indices = @transform_8, window_bounds = array<i64: 1, 128>}, {pipeline_mode = #tpu.pipeline_mode<synchronous>, transform_indices = @transform_9, window_bounds = array<i64: 128, 128>}, {pipeline_mode = #tpu.pipeline_mode<synchronous>, transform_indices = @transform_10, window_bounds = array<i64: 1, 128>}, {transform_indices = @transform_11, window_bounds = array<i64: 8, 128>}]} {
    %c0 = arith.constant 0 : index
    %c0_0 = arith.constant 0 : index
    %0 = vector.load %arg1[%c0, %c0_0] : memref<8x784xf32, #tpu.memory_space<vmem>>, vector<8x784xf32>
    %1 = arith.truncf %0 : vector<8x784xf32> to vector<8x784xbf16>
    %c0_1 = arith.constant 0 : index
    %c0_2 = arith.constant 0 : index
    %2 = vector.load %arg2[%c0_1, %c0_2] : memref<784x512xbf16, #tpu.memory_space<vmem>>, vector<784x512xbf16>
    %cst = arith.constant dense<0.000000e+00> : vector<8x512xf32>
    %3 = tpu.matmul %1, %2, %cst {dimension_numbers = #tpu.dot_dimension_numbers<[1], [0], [0], [1], [0, 0, 1, 1], [], []>} : vector<8x784xbf16>, vector<784x512xbf16>, vector<8x512xf32> -> vector<8x512xf32>
    %c0_3 = arith.constant 0 : index
    %c0_4 = arith.constant 0 : index
    %4 = vector.load %arg3[%c0_3, %c0_4] : memref<1x512xf32, #tpu.memory_space<vmem>>, vector<1x512xf32>
    %5 = vector.broadcast %4 : vector<1x512xf32> to vector<8x512xf32>
    %6 = arith.addf %3, %5 : vector<8x512xf32>
    %cst_5 = arith.constant 0.000000e+00 : f32
    %7 = vector.broadcast %cst_5 : f32 to vector<8x512xf32>
    %8 = arith.maximumf %6, %7 : vector<8x512xf32>
    %9 = arith.truncf %8 : vector<8x512xf32> to vector<8x512xbf16>
    %c0_6 = arith.constant 0 : index
    %c0_7 = arith.constant 0 : index
    %10 = vector.load %arg4[%c0_6, %c0_7] : memref<512x256xbf16, #tpu.memory_space<vmem>>, vector<512x256xbf16>
    %cst_8 = arith.constant dense<0.000000e+00> : vector<8x256xf32>
    %11 = tpu.matmul %9, %10, %cst_8 {dimension_numbers = #tpu.dot_dimension_numbers<[1], [0], [0], [1], [0, 0, 1, 1], [], []>} : vector<8x512xbf16>, vector<512x256xbf16>, vector<8x256xf32> -> vector<8x256xf32>
    %c0_9 = arith.constant 0 : index
    %c0_10 = arith.constant 0 : index
    %12 = vector.load %arg5[%c0_9, %c0_10] : memref<1x256xf32, #tpu.memory_space<vmem>>, vector<1x256xf32>
    %13 = vector.broadcast %12 : vector<1x256xf32> to vector<8x256xf32>
    %14 = arith.addf %11, %13 : vector<8x256xf32>
    %cst_11 = arith.constant 0.000000e+00 : f32
    %15 = vector.broadcast %cst_11 : f32 to vector<8x256xf32>
    %16 = arith.maximumf %14, %15 : vector<8x256xf32>
    %17 = arith.truncf %16 : vector<8x256xf32> to vector<8x256xbf16>
    %c0_12 = arith.constant 0 : index
    %c0_13 = arith.constant 0 : index
    %18 = vector.load %arg6[%c0_12, %c0_13] : memref<256x128xbf16, #tpu.memory_space<vmem>>, vector<256x128xbf16>
    %cst_14 = arith.constant dense<0.000000e+00> : vector<8x128xf32>
    %19 = tpu.matmul %17, %18, %cst_14 {dimension_numbers = #tpu.dot_dimension_numbers<[1], [0], [0], [1], [0, 0, 1, 1], [], []>} : vector<8x256xbf16>, vector<256x128xbf16>, vector<8x128xf32> -> vector<8x128xf32>
    %c0_15 = arith.constant 0 : index
    %c0_16 = arith.constant 0 : index
    %20 = vector.load %arg7[%c0_15, %c0_16] : memref<1x128xf32, #tpu.memory_space<vmem>>, vector<1x128xf32>
    %21 = vector.broadcast %20 : vector<1x128xf32> to vector<8x128xf32>
    %22 = arith.addf %19, %21 : vector<8x128xf32>
    %cst_17 = arith.constant 0.000000e+00 : f32
    %23 = vector.broadcast %cst_17 : f32 to vector<8x128xf32>
    %24 = arith.maximumf %22, %23 : vector<8x128xf32>
    %25 = arith.truncf %24 : vector<8x128xf32> to vector<8x128xbf16>
    %c0_18 = arith.constant 0 : index
    %c0_19 = arith.constant 0 : index
    %26 = vector.load %arg8[%c0_18, %c0_19] : memref<128x128xbf16, #tpu.memory_space<vmem>>, vector<128x128xbf16>
    %cst_20 = arith.constant dense<0.000000e+00> : vector<8x128xf32>
    %27 = tpu.matmul %25, %26, %cst_20 {dimension_numbers = #tpu.dot_dimension_numbers<[1], [0], [0], [1], [0, 0, 1, 1], [], []>} : vector<8x128xbf16>, vector<128x128xbf16>, vector<8x128xf32> -> vector<8x128xf32>
    %c0_21 = arith.constant 0 : index
    %c0_22 = arith.constant 0 : index
    %28 = vector.load %arg9[%c0_21, %c0_22] : memref<1x128xf32, #tpu.memory_space<vmem>>, vector<1x128xf32>
    %29 = vector.broadcast %28 : vector<1x128xf32> to vector<8x128xf32>
    %30 = arith.addf %27, %29 : vector<8x128xf32>
    %cst_23 = arith.constant 0.000000e+00 : f32
    %31 = vector.broadcast %cst_23 : f32 to vector<8x128xf32>
    %32 = arith.maximumf %30, %31 : vector<8x128xf32>
    %33 = arith.truncf %32 : vector<8x128xf32> to vector<8x128xbf16>
    %c0_24 = arith.constant 0 : index
    %c0_25 = arith.constant 0 : index
    %34 = vector.load %arg10[%c0_24, %c0_25] : memref<128x128xbf16, #tpu.memory_space<vmem>>, vector<128x128xbf16>
    %cst_26 = arith.constant dense<0.000000e+00> : vector<8x128xf32>
    %35 = tpu.matmul %33, %34, %cst_26 {dimension_numbers = #tpu.dot_dimension_numbers<[1], [0], [0], [1], [0, 0, 1, 1], [], []>} : vector<8x128xbf16>, vector<128x128xbf16>, vector<8x128xf32> -> vector<8x128xf32>
    %c0_27 = arith.constant 0 : index
    %c0_28 = arith.constant 0 : index
    %36 = vector.load %arg11[%c0_27, %c0_28] : memref<1x128xf32, #tpu.memory_space<vmem>>, vector<1x128xf32>
    %37 = vector.broadcast %36 : vector<1x128xf32> to vector<8x128xf32>
    %38 = arith.addf %35, %37 : vector<8x128xf32>
    %cst_29 = arith.constant dense<0xFF800000> : vector<8xf32>
    %39 = vector.multi_reduction <maximumf>, %38, %cst_29 [1] : vector<8x128xf32> to vector<8xf32>
    %40 = vector.shape_cast %39 : vector<8xf32> to vector<8x1xf32>
    %41 = vector.broadcast %40 : vector<8x1xf32> to vector<8x128xf32>
    %42 = arith.subf %38, %41 : vector<8x128xf32>
    %43 = math.exp %42 : vector<8x128xf32>
    %cst_30 = arith.constant dense<0.000000e+00> : vector<8xf32>
    %44 = vector.multi_reduction <add>, %43, %cst_30 [1] : vector<8x128xf32> to vector<8xf32>
    %45 = vector.shape_cast %44 : vector<8xf32> to vector<8x1xf32>
    %46 = math.log %45 : vector<8x1xf32>
    %47 = vector.broadcast %46 : vector<8x1xf32> to vector<8x128xf32>
    %48 = arith.subf %42, %47 : vector<8x128xf32>
    %49 = arith.truncf %48 : vector<8x128xf32> to vector<8x128xbf16>
    %c0_31 = arith.constant 0 : index
    %c0_32 = arith.constant 0 : index
    %50 = vector.load %arg12[%c0_31, %c0_32] : memref<8x128xbf16, #tpu.memory_space<vmem>>, vector<8x128xbf16>
    tpu.vector_store %arg12[%c0_31, %c0_32], %49 {strides = array<i32>} : memref<8x128xbf16, #tpu.memory_space<vmem>>, vector<8x128xbf16>,
    return
  }
  func.func @transform_0(%arg0: i32) -> (i32, i32) {
    %c0_i32 = arith.constant 0 : i32
    %c0_i32_0 = arith.constant 0 : i32
    return %arg0, %c0_i32 : i32, i32
  }
  func.func @transform_1(%arg0: i32) -> (i32, i32) {
    %c0_i32 = arith.constant 0 : i32
    %c0_i32_0 = arith.constant 0 : i32
    %c0_i32_1 = arith.constant 0 : i32
    return %c0_i32, %c0_i32_0 : i32, i32
  }
  func.func @transform_2(%arg0: i32) -> (i32, i32) {
    %c0_i32 = arith.constant 0 : i32
    %c0_i32_0 = arith.constant 0 : i32
    %c0_i32_1 = arith.constant 0 : i32
    return %c0_i32, %c0_i32_0 : i32, i32
  }
  func.func @transform_3(%arg0: i32) -> (i32, i32) {
    %c0_i32 = arith.constant 0 : i32
    %c0_i32_0 = arith.constant 0 : i32
    %c0_i32_1 = arith.constant 0 : i32
    return %c0_i32, %c0_i32_0 : i32, i32
  }
  func.func @transform_4(%arg0: i32) -> (i32, i32) {
    %c0_i32 = arith.constant 0 : i32
    %c0_i32_0 = arith.constant 0 : i32
    %c0_i32_1 = arith.constant 0 : i32
    return %c0_i32, %c0_i32_0 : i32, i32
  }
  func.func @transform_5(%arg0: i32) -> (i32, i32) {
    %c0_i32 = arith.constant 0 : i32
    %c0_i32_0 = arith.constant 0 : i32
    %c0_i32_1 = arith.constant 0 : i32
    return %c0_i32, %c0_i32_0 : i32, i32
  }
  func.func @transform_6(%arg0: i32) -> (i32, i32) {
    %c0_i32 = arith.constant 0 : i32
    %c0_i32_0 = arith.constant 0 : i32
    %c0_i32_1 = arith.constant 0 : i32
    return %c0_i32, %c0_i32_0 : i32, i32
  }
  func.func @transform_7(%arg0: i32) -> (i32, i32) {
    %c0_i32 = arith.constant 0 : i32
    %c0_i32_0 = arith.constant 0 : i32
    %c0_i32_1 = arith.constant 0 : i32
    return %c0_i32, %c0_i32_0 : i32, i32
  }
  func.func @transform_8(%arg0: i32) -> (i32, i32) {
    %c0_i32 = arith.constant 0 : i32
    %c0_i32_0 = arith.constant 0 : i32
    %c0_i32_1 = arith.constant 0 : i32
    return %c0_i32, %c0_i32_0 : i32, i32
  }
  func.func @transform_9(%arg0: i32) -> (i32, i32) {
    %c0_i32 = arith.constant 0 : i32
    %c0_i32_0 = arith.constant 0 : i32
    %c0_i32_1 = arith.constant 0 : i32
    return %c0_i32, %c0_i32_0 : i32, i32
  }
  func.func @transform_10(%arg0: i32) -> (i32, i32) {
    %c0_i32 = arith.constant 0 : i32
    %c0_i32_0 = arith.constant 0 : i32
    %c0_i32_1 = arith.constant 0 : i32
    return %c0_i32, %c0_i32_0 : i32, i32
  }
  func.func @transform_11(%arg0: i32) -> (i32, i32) {
    %c0_i32 = arith.constant 0 : i32
    %c0_i32_0 = arith.constant 0 : i32
    return %arg0, %c0_i32 : i32, i32
  }
}

</mosaic_0001>

<llo_original>
// kernel: tpu_custom_call.1
$region0: #{tpu_custom_call.1}
  #allocation0 [shape = 'u32[]', space=smem, size = 0x4, offset = 0x4, fixed_abs, tag = 'smem constant byte address 0x4 - core index']
  #allocation1 [shape = 'u32[144,128]{1,0:T(1,128)}', space=vmem, size = 0x12000, scoped, tag = 'internal scratch']
  %s0 = inlined_call_operand.hbm [shape: f32[8,784], index: 0, kind: input, shape index: {}]
  %s1 = inlined_call_operand.hbm [shape: bf16[784,512], index: 1, kind: input, shape index: {}]
  %s2 = inlined_call_operand.vmem [shape: f32[1,512], index: 2, kind: input, shape index: {}]
  %s3 = inlined_call_operand.hbm [shape: bf16[512,256], index: 3, kind: input, shape index: {}]
  %s4 = inlined_call_operand.vmem [shape: f32[1,256], index: 4, kind: input, shape index: {}]
  %s5 = inlined_call_operand.hbm [shape: bf16[256,128], index: 5, kind: input, shape index: {}]
  %s6 = inlined_call_operand.vmem [shape: f32[1,128], index: 6, kind: input, shape index: {}]
  %s7 = inlined_call_operand.hbm [shape: bf16[128,128], index: 7, kind: input, shape index: {}]
  %s8 = inlined_call_operand.vmem [shape: f32[1,128], index: 8, kind: input, shape index: {}]
  %s9 = inlined_call_operand.hbm [shape: bf16[128,128], index: 9, kind: input, shape index: {}]
  %s10 = inlined_call_operand.vmem [shape: f32[1,128], index: 10, kind: input, shape index: {}]
  %s11 = inlined_call_operand.hbm [shape: bf16[8,128], index: 11, kind: output, shape index: {}]
  %s12 = sld [smem:[#allocation0]]
  $region78: #{tpu_custom_call.1} parent=0
    _
  %s14 = ssub.s32 1, %s12
  %s15 = scalar_select 0, %s14, %s12
  $region1: #{tpu_custom_call.1} parent=0
    #allocation2 [shape = 'u8[28672]{0}', space=vmem, size = 0x7000, scoped, tag = 'input window, operand 0, single buffered']
    #allocation3 [shape = 's32[1]{0}', space=sflag, size = 0x4, scoped, tag = 'scoped memory for tpu_custom_call.1']
    #allocation4 [shape = 's32[1]{0}', space=sflag, size = 0x4, scoped, tag = 'scoped memory for tpu_custom_call.1']
    #allocation5 [shape = 'u8[802816]{0}', space=vmem, size = 0xc4000, scoped, tag = 'input window, operand 1, single buffered']
    #allocation6 [shape = 's32[1]{0}', space=sflag, size = 0x4, scoped, tag = 'scoped memory for tpu_custom_call.1']
    #allocation7 [shape = 'u8[262144]{0}', space=vmem, size = 0x40000, scoped, tag = 'input window, operand 3, single buffered']
    #allocation8 [shape = 'u8[65536]{0}', space=vmem, size = 0x10000, scoped, tag = 'input window, operand 5, single buffered']
    #allocation9 [shape = 's32[1]{0}', space=sflag, size = 0x4, scoped, tag = 'scoped memory for tpu_custom_call.1']
    #allocation10 [shape = 'u8[32768]{0}', space=vmem, size = 0x8000, scoped, tag = 'input window, operand 7, single buffered']
    #allocation11 [shape = 'u8[32768]{0}', space=vmem, size = 0x8000, scoped, tag = 'input window, operand 9, single buffered']
    #allocation12 [shape = 's32[1]{0}', space=sflag, size = 0x4, scoped, tag = 'scoped memory for tpu_custom_call.1']
    #allocation13 [shape = 'u8[2048]{0}', space=vmem, size = 0x800, scoped, tag = 'output window, operand 0, single buffered']
    %16 = vsyncpa [#allocation3], 0
    %17 = vsyncpa [#allocation6], 0
    %18 = vsyncpa [#allocation9], 0
    %19 = vsyncpa [#allocation12], 0
    %20 = vsyncpa [#allocation4], 0
    // Predicated region
    $region2: #{tpu_custom_call.1} parent=1 // pred_check
      _
    $region3: #{tpu_custom_call.1} parent=1 // pred_check_branch
      %22 = sbr.rel (0) target = $region5
    $region4: #{tpu_custom_call.1} parent=1 // pred_region
      %s24 = ssub.s32 896, 896
      %25 = vsyncadd [#allocation3], %s24
      %s27 = sshll.u32 [#allocation2], 4
      %s28 = int_to_ptr.vmem [resolvable:$true] %s27
      %30 = dma.hbm_to_vmem [thread:$0]  %s0, 896, %s28, [#allocation3]
    $region5: #{tpu_custom_call.1} parent=1 // pred_fallthru
      _
    // Predicated region
    $region6: #{tpu_custom_call.1} parent=1 // pred_check
      _
    $region7: #{tpu_custom_call.1} parent=1 // pred_check_branch
      %32 = sbr.rel (0) target = $region9
    $region8: #{tpu_custom_call.1} parent=1 // pred_region
      %s34 = ssub.s32 25088, 25088
      %35 = vsyncadd [#allocation6], %s34
      %s36 = sshll.u32 [#allocation5], 4
      %s37 = int_to_ptr.vmem [resolvable:$true] %s36
      %42 = dma.hbm_to_vmem [thread:$0]  %s1, 25088, %s37, [#allocation6], 256, 256, 16
    $region9: #{tpu_custom_call.1} parent=1 // pred_fallthru
      _
    // Predicated region
    $region10: #{tpu_custom_call.1} parent=1 // pred_check
      _
    $region11: #{tpu_custom_call.1} parent=1 // pred_check_branch
      %44 = sbr.rel (0) target = $region13
    $region12: #{tpu_custom_call.1} parent=1 // pred_region
      _
    $region13: #{tpu_custom_call.1} parent=1 // pred_fallthru
      _
    // Predicated region
    $region14: #{tpu_custom_call.1} parent=1 // pred_check
      _
    $region15: #{tpu_custom_call.1} parent=1 // pred_check_branch
      %46 = sbr.rel (0) target = $region17
    $region16: #{tpu_custom_call.1} parent=1 // pred_region
      %s48 = ssub.s32 8192, 8192
      %49 = vsyncadd [#allocation6], %s48
      %s50 = sshll.u32 [#allocation7], 4
      %s51 = int_to_ptr.vmem [resolvable:$true] %s50
      %56 = dma.hbm_to_vmem [thread:$0]  %s3, 8192, %s51, [#allocation6], 128, 128, 8
    $region17: #{tpu_custom_call.1} parent=1 // pred_fallthru
      _
    // Predicated region
    $region18: #{tpu_custom_call.1} parent=1 // pred_check
      _
    $region19: #{tpu_custom_call.1} parent=1 // pred_check_branch
      %58 = sbr.rel (0) target = $region21
    $region20: #{tpu_custom_call.1} parent=1 // pred_region
      _
    $region21: #{tpu_custom_call.1} parent=1 // pred_fallthru
      _
    // Predicated region
    $region22: #{tpu_custom_call.1} parent=1 // pred_check
      _
    $region23: #{tpu_custom_call.1} parent=1 // pred_check_branch
      %60 = sbr.rel (0) target = $region25
    $region24: #{tpu_custom_call.1} parent=1 // pred_region
      %s62 = ssub.s32 2048, 2048
      %63 = vsyncadd [#allocation9], %s62
      %s64 = sshll.u32 [#allocation8], 4
      %s65 = int_to_ptr.vmem [resolvable:$true] %s64
      %70 = dma.hbm_to_vmem [thread:$0]  %s5, 2048, %s65, [#allocation9], 64, 64, 4
    $region25: #{tpu_custom_call.1} parent=1 // pred_fallthru
      _
    // Predicated region
    $region26: #{tpu_custom_call.1} parent=1 // pred_check
      _
    $region27: #{tpu_custom_call.1} parent=1 // pred_check_branch
      %72 = sbr.rel (0) target = $region29
    $region28: #{tpu_custom_call.1} parent=1 // pred_region
      _
    $region29: #{tpu_custom_call.1} parent=1 // pred_fallthru
      _
    // Predicated region
    $region30: #{tpu_custom_call.1} parent=1 // pred_check
      _
    $region31: #{tpu_custom_call.1} parent=1 // pred_check_branch
      %74 = sbr.rel (0) target = $region33
    $region32: #{tpu_custom_call.1} parent=1 // pred_region
      %s76 = ssub.s32 1024, 1024
      %77 = vsyncadd [#allocation9], %s76
      %s78 = sshll.u32 [#allocation10], 4
      %s79 = int_to_ptr.vmem [resolvable:$true] %s78
      %84 = dma.hbm_to_vmem [thread:$0]  %s7, 1024, %s79, [#allocation9], 64, 64, 4
    $region33: #{tpu_custom_call.1} parent=1 // pred_fallthru
      _
    // Predicated region
    $region34: #{tpu_custom_call.1} parent=1 // pred_check
      _
    $region35: #{tpu_custom_call.1} parent=1 // pred_check_branch
      %86 = sbr.rel (0) target = $region37
    $region36: #{tpu_custom_call.1} parent=1 // pred_region
      _
    $region37: #{tpu_custom_call.1} parent=1 // pred_fallthru
      _
    // Predicated region
    $region38: #{tpu_custom_call.1} parent=1 // pred_check
      _
    $region39: #{tpu_custom_call.1} parent=1 // pred_check_branch
      %88 = sbr.rel (0) target = $region41
    $region40: #{tpu_custom_call.1} parent=1 // pred_region
      %s90 = ssub.s32 1024, 1024
      %91 = vsyncadd [#allocation12], %s90
      %s92 = sshll.u32 [#allocation11], 4
      %s93 = int_to_ptr.vmem [resolvable:$true] %s92
      %98 = dma.hbm_to_vmem [thread:$0]  %s9, 1024, %s93, [#allocation12], 64, 64, 4
    $region41: #{tpu_custom_call.1} parent=1 // pred_fallthru
      _
    // Predicated region
    $region42: #{tpu_custom_call.1} parent=1 // pred_check
      _
    $region43: #{tpu_custom_call.1} parent=1 // pred_check_branch
      %100 = sbr.rel (0) target = $region45
    $region44: #{tpu_custom_call.1} parent=1 // pred_region
      _
    $region45: #{tpu_custom_call.1} parent=1 // pred_fallthru
      _
    // Predicated region
    $region46: #{tpu_custom_call.1} parent=1 // pred_check
      _
    $region47: #{tpu_custom_call.1} parent=1 // pred_check_branch
      %102 = sbr.rel (0) target = $region49
    $region48: #{tpu_custom_call.1} parent=1 // pred_region
      %103 = dma.done [#allocation3], 896
    $region49: #{tpu_custom_call.1} parent=1 // pred_fallthru
      _
    // Predicated region
    $region50: #{tpu_custom_call.1} parent=1 // pred_check
      _
    $region51: #{tpu_custom_call.1} parent=1 // pred_check_branch
      %105 = sbr.rel (0) target = $region53
    $region52: #{tpu_custom_call.1} parent=1 // pred_region
      %106 = dma.done [#allocation6], 25088
    $region53: #{tpu_custom_call.1} parent=1 // pred_fallthru
      _
    // Predicated region
    $region54: #{tpu_custom_call.1} parent=1 // pred_check
      _
    $region55: #{tpu_custom_call.1} parent=1 // pred_check_branch
      %108 = sbr.rel (0) target = $region57
    $region56: #{tpu_custom_call.1} parent=1 // pred_region
      %109 = dma.done [#allocation6], 8192
    $region57: #{tpu_custom_call.1} parent=1 // pred_fallthru
      _
    // Predicated region
    $region58: #{tpu_custom_call.1} parent=1 // pred_check
      _
    $region59: #{tpu_custom_call.1} parent=1 // pred_check_branch
      %111 = sbr.rel (0) target = $region61
    $region60: #{tpu_custom_call.1} parent=1 // pred_region
      %112 = dma.done [#allocation9], 2048
    $region61: #{tpu_custom_call.1} parent=1 // pred_fallthru
      _
    // Predicated region
    $region62: #{tpu_custom_call.1} parent=1 // pred_check
      _
    $region63: #{tpu_custom_call.1} parent=1 // pred_check_branch
      %114 = sbr.rel (0) target = $region65
    $region64: #{tpu_custom_call.1} parent=1 // pred_region
      %115 = dma.done [#allocation9], 1024
    $region65: #{tpu_custom_call.1} parent=1 // pred_fallthru
      _
    // Predicated region
    $region66: #{tpu_custom_call.1} parent=1 // pred_check
      _
    $region67: #{tpu_custom_call.1} parent=1 // pred_check_branch
      %117 = sbr.rel (0) target = $region69
    $region68: #{tpu_custom_call.1} parent=1 // pred_region
      %118 = dma.done [#allocation12], 1024
    $region69: #{tpu_custom_call.1} parent=1 // pred_fallthru
      _
    %v120 = vld [vmem:[#allocation2] sm:$0xff]
    %v121 = vld [vmem:[#allocation2 + $0x8] sm:$0xff]
    %v122 = vld [vmem:[#allocation2 + $0x10] sm:$0xff]
    %v123 = vld [vmem:[#allocation2 + $0x18] sm:$0xff]
    %v124 = vld [vmem:[#allocation2 + $0x20] sm:$0xff]
    %v125 = vld [vmem:[#allocation2 + $0x28] sm:$0xff]
    %v126 = vld [vmem:[#allocation2 + $0x30] sm:$0xff]
    %v127 = vpack.c.bf16 %v120, %v120
    %v128 = vpack.c.bf16 %v121, %v121
    %v129 = vpack.c.bf16 %v122, %v122
    %v130 = vpack.c.bf16 %v123, %v123
    %v131 = vpack.c.bf16 %v124, %v124
    %v132 = vpack.c.bf16 %v125, %v125
    %v133 = vpack.c.bf16 %v126, %v126
    %v134 = vld [vmem:[#allocation5] sm:$0xff]
    %v135 = vld [vmem:[#allocation5 + $0x8] sm:$0xff]
    %v136 = vld [vmem:[#allocation5 + $0x10] sm:$0xff]
    %v137 = vld [vmem:[#allocation5 + $0x18] sm:$0xff]
    %v138 = vld [vmem:[#allocation5 + $0x20] sm:$0xff]
    %v139 = vld [vmem:[#allocation5 + $0x28] sm:$0xff]
    %v140 = vld [vmem:[#allocation5 + $0x30] sm:$0xff]
    %v141 = vld [vmem:[#allocation5 + $0x38] sm:$0xff]
    %v142 = vld [vmem:[#allocation5 + $0x40] sm:$0xff]
    %v143 = vld [vmem:[#allocation5 + $0x48] sm:$0xff]
    %v144 = vld [vmem:[#allocation5 + $0x50] sm:$0xff]
    %v145 = vld [vmem:[#allocation5 + $0x58] sm:$0xff]
    %v146 = vld [vmem:[#allocation5 + $0x60] sm:$0xff]
    %v147 = vld [vmem:[#allocation5 + $0x68] sm:$0xff]
    %v148 = vld [vmem:[#allocation5 + $0x70] sm:$0xff]
    %v149 = vld [vmem:[#allocation5 + $0x78] sm:$0xff]
    %v150 = vld [vmem:[#allocation5 + $0x80] sm:$0xff]
    %v151 = vld [vmem:[#allocation5 + $0x88] sm:$0xff]
    %v152 = vld [vmem:[#allocation5 + $0x90] sm:$0xff]
    %v153 = vld [vmem:[#allocation5 + $0x98] sm:$0xff]
    %v154 = vld [vmem:[#allocation5 + $0xa0] sm:$0xff]
    %v155 = vld [vmem:[#allocation5 + $0xa8] sm:$0xff]
    %v156 = vld [vmem:[#allocation5 + $0xb0] sm:$0xff]
    %v157 = vld [vmem:[#allocation5 + $0xb8] sm:$0xff]
    %v158 = vld [vmem:[#allocation5 + $0xc0] sm:$0xff]
    %v159 = vld [vmem:[#allocation5 + $0xc8] sm:$0xff]
    %v160 = vld [vmem:[#allocation5 + $0xd0] sm:$0xff]
    %v161 = vld [vmem:[#allocation5 + $0xd8] sm:$0xff]
    %v162 = vld [vmem:[#allocation5 + $0xe0] sm:$0xff]
    %v163 = vld [vmem:[#allocation5 + $0xe8] sm:$0xff]
    %v164 = vld [vmem:[#allocation5 + $0xf0] sm:$0xff]
    %v165 = vld [vmem:[#allocation5 + $0xf8] sm:$0xff]
    %v166 = vld [vmem:[#allocation5 + $0x100] sm:$0xff]
    %v167 = vld [vmem:[#allocation5 + $0x108] sm:$0xff]
    %v168 = vld [vmem:[#allocation5 + $0x110] sm:$0xff]
    %v169 = vld [vmem:[#allocation5 + $0x118] sm:$0xff]
    %v170 = vld [vmem:[#allocation5 + $0x120] sm:$0xff]
    %v171 = vld [vmem:[#allocation5 + $0x128] sm:$0xff]
    %v172 = vld [vmem:[#allocation5 + $0x130] sm:$0xff]
    %v173 = vld [vmem:[#allocation5 + $0x138] sm:$0xff]
    %v174 = vld [vmem:[#allocation5 + $0x140] sm:$0xff]
    %v175 = vld [vmem:[#allocation5 + $0x148] sm:$0xff]
    %v176 = vld [vmem:[#allocation5 + $0x150] sm:$0xff]
    %v177 = vld [vmem:[#allocation5 + $0x158] sm:$0xff]
    %v178 = vld [vmem:[#allocation5 + $0x160] sm:$0xff]
    %v179 = vld [vmem:[#allocation5 + $0x168] sm:$0xff]
    %v180 = vld [vmem:[#allocation5 + $0x170] sm:$0xff]
    %v181 = vld [vmem:[#allocation5 + $0x178] sm:$0xff]
    %v182 = vld [vmem:[#allocation5 + $0x180] sm:$0xff]
    %v183 = vld [vmem:[#allocation5 + $0x188] sm:$0xff]
    %v184 = vld [vmem:[#allocation5 + $0x190] sm:$0xff]
    %v185 = vld [vmem:[#allocation5 + $0x198] sm:$0xff]
    %v186 = vld [vmem:[#allocation5 + $0x1a0] sm:$0xff]
    %v187 = vld [vmem:[#allocation5 + $0x1a8] sm:$0xff]
    %v188 = vld [vmem:[#allocation5 + $0x1b0] sm:$0xff]
    %v189 = vld [vmem:[#allocation5 + $0x1b8] sm:$0xff]
    %v190 = vld [vmem:[#allocation5 + $0x1c0] sm:$0xff]
    %v191 = vld [vmem:[#allocation5 + $0x1c8] sm:$0xff]
    %v192 = vld [vmem:[#allocation5 + $0x1d0] sm:$0xff]
    %v193 = vld [vmem:[#allocation5 + $0x1d8] sm:$0xff]
    %v194 = vld [vmem:[#allocation5 + $0x1e0] sm:$0xff]
    %v195 = vld [vmem:[#allocation5 + $0x1e8] sm:$0xff]
    %v196 = vld [vmem:[#allocation5 + $0x1f0] sm:$0xff]
    %v197 = vld [vmem:[#allocation5 + $0x1f8] sm:$0xff]
    %v198 = vld [vmem:[#allocation5 + $0x200] sm:$0xff]
    %v199 = vld [vmem:[#allocation5 + $0x208] sm:$0xff]
    %v200 = vld [vmem:[#allocation5 + $0x210] sm:$0xff]
    %v201 = vld [vmem:[#allocation5 + $0x218] sm:$0xff]
    %v202 = vld [vmem:[#allocation5 + $0x220] sm:$0xff]
    %v203 = vld [vmem:[#allocation5 + $0x228] sm:$0xff]
    %v204 = vld [vmem:[#allocation5 + $0x230] sm:$0xff]
    %v205 = vld [vmem:[#allocation5 + $0x238] sm:$0xff]
    %v206 = vld [vmem:[#allocation5 + $0x240] sm:$0xff]
    %v207 = vld [vmem:[#allocation5 + $0x248] sm:$0xff]
    %v208 = vld [vmem:[#allocation5 + $0x250] sm:$0xff]
    %v209 = vld [vmem:[#allocation5 + $0x258] sm:$0xff]
    %v210 = vld [vmem:[#allocation5 + $0x260] sm:$0xff]
    %v211 = vld [vmem:[#allocation5 + $0x268] sm:$0xff]
    %v212 = vld [vmem:[#allocation5 + $0x270] sm:$0xff]
    %v213 = vld [vmem:[#allocation5 + $0x278] sm:$0xff]
    %v214 = vld [vmem:[#allocation5 + $0x280] sm:$0xff]
    %v215 = vld [vmem:[#allocation5 + $0x288] sm:$0xff]
    %v216 = vld [vmem:[#allocation5 + $0x290] sm:$0xff]
    %v217 = vld [vmem:[#allocation5 + $0x298] sm:$0xff]
    %v218 = vld [vmem:[#allocation5 + $0x2a0] sm:$0xff]
    %v219 = vld [vmem:[#allocation5 + $0x2a8] sm:$0xff]
    %v220 = vld [vmem:[#allocation5 + $0x2b0] sm:$0xff]
    %v221 = vld [vmem:[#allocation5 + $0x2b8] sm:$0xff]
    %v222 = vld [vmem:[#allocation5 + $0x2c0] sm:$0xff]
    %v223 = vld [vmem:[#allocation5 + $0x2c8] sm:$0xff]
    %v224 = vld [vmem:[#allocation5 + $0x2d0] sm:$0xff]
    %v225 = vld [vmem:[#allocation5 + $0x2d8] sm:$0xff]
    %v226 = vld [vmem:[#allocation5 + $0x2e0] sm:$0xff]
    %v227 = vld [vmem:[#allocation5 + $0x2e8] sm:$0xff]
    %v228 = vld [vmem:[#allocation5 + $0x2f0] sm:$0xff]
    %v229 = vld [vmem:[#allocation5 + $0x2f8] sm:$0xff]
    %v230 = vld [vmem:[#allocation5 + $0x300] sm:$0xff]
    %v231 = vld [vmem:[#allocation5 + $0x308] sm:$0xff]
    %v232 = vld [vmem:[#allocation5 + $0x310] sm:$0xff]
    %v233 = vld [vmem:[#allocation5 + $0x318] sm:$0xff]
    %v234 = vld [vmem:[#allocation5 + $0x320] sm:$0xff]
    %v235 = vld [vmem:[#allocation5 + $0x328] sm:$0xff]
    %v236 = vld [vmem:[#allocation5 + $0x330] sm:$0xff]
    %v237 = vld [vmem:[#allocation5 + $0x338] sm:$0xff]
    %v238 = vld [vmem:[#allocation5 + $0x340] sm:$0xff]
    %v239 = vld [vmem:[#allocation5 + $0x348] sm:$0xff]
    %v240 = vld [vmem:[#allocation5 + $0x350] sm:$0xff]
    %v241 = vld [vmem:[#allocation5 + $0x358] sm:$0xff]
    %v242 = vld [vmem:[#allocation5 + $0x360] sm:$0xff]
    %v243 = vld [vmem:[#allocation5 + $0x368] sm:$0xff]
    %v244 = vld [vmem:[#allocation5 + $0x370] sm:$0xff]
    %v245 = vld [vmem:[#allocation5 + $0x378] sm:$0xff]
    %v246 = vld [vmem:[#allocation5 + $0x380] sm:$0xff]
    %v247 = vld [vmem:[#allocation5 + $0x388] sm:$0xff]
    %v248 = vld [vmem:[#allocation5 + $0x390] sm:$0xff]
    %v249 = vld [vmem:[#allocation5 + $0x398] sm:$0xff]
    %v250 = vld [vmem:[#allocation5 + $0x3a0] sm:$0xff]
    %v251 = vld [vmem:[#allocation5 + $0x3a8] sm:$0xff]
    %v252 = vld [vmem:[#allocation5 + $0x3b0] sm:$0xff]
    %v253 = vld [vmem:[#allocation5 + $0x3b8] sm:$0xff]
    %v254 = vld [vmem:[#allocation5 + $0x3c0] sm:$0xff]
    %v255 = vld [vmem:[#allocation5 + $0x3c8] sm:$0xff]
    %v256 = vld [vmem:[#allocation5 + $0x3d0] sm:$0xff]
    %v257 = vld [vmem:[#allocation5 + $0x3d8] sm:$0xff]
    %v258 = vld [vmem:[#allocation5 + $0x3e0] sm:$0xff]
    %v259 = vld [vmem:[#allocation5 + $0x3e8] sm:$0xff]
    %v260 = vld [vmem:[#allocation5 + $0x3f0] sm:$0xff]
    %v261 = vld [vmem:[#allocation5 + $0x3f8] sm:$0xff]
    %v262 = vld [vmem:[#allocation5 + $0x400] sm:$0xff]
    %v263 = vld [vmem:[#allocation5 + $0x408] sm:$0xff]
    %v264 = vld [vmem:[#allocation5 + $0x410] sm:$0xff]
    %v265 = vld [vmem:[#allocation5 + $0x418] sm:$0xff]
    %v266 = vld [vmem:[#allocation5 + $0x420] sm:$0xff]
    %v267 = vld [vmem:[#allocation5 + $0x428] sm:$0xff]
    %v268 = vld [vmem:[#allocation5 + $0x430] sm:$0xff]
    %v269 = vld [vmem:[#allocation5 + $0x438] sm:$0xff]
    %v270 = vld [vmem:[#allocation5 + $0x440] sm:$0xff]
    %v271 = vld [vmem:[#allocation5 + $0x448] sm:$0xff]
    %v272 = vld [vmem:[#allocation5 + $0x450] sm:$0xff]
    %v273 = vld [vmem:[#allocation5 + $0x458] sm:$0xff]
    %v274 = vld [vmem:[#allocation5 + $0x460] sm:$0xff]
    %v275 = vld [vmem:[#allocation5 + $0x468] sm:$0xff]
    %v276 = vld [vmem:[#allocation5 + $0x470] sm:$0xff]
    %v277 = vld [vmem:[#allocation5 + $0x478] sm:$0xff]
    %v278 = vld [vmem:[#allocation5 + $0x480] sm:$0xff]
    %v279 = vld [vmem:[#allocation5 + $0x488] sm:$0xff]
    %v280 = vld [vmem:[#allocation5 + $0x490] sm:$0xff]
    %v281 = vld [vmem:[#allocation5 + $0x498] sm:$0xff]
    %v282 = vld [vmem:[#allocation5 + $0x4a0] sm:$0xff]
    %v283 = vld [vmem:[#allocation5 + $0x4a8] sm:$0xff]
    %v284 = vld [vmem:[#allocation5 + $0x4b0] sm:$0xff]
    %v285 = vld [vmem:[#allocation5 + $0x4b8] sm:$0xff]
    %v286 = vld [vmem:[#allocation5 + $0x4c0] sm:$0xff]
    %v287 = vld [vmem:[#allocation5 + $0x4c8] sm:$0xff]
    %v288 = vld [vmem:[#allocation5 + $0x4d0] sm:$0xff]
    %v289 = vld [vmem:[#allocation5 + $0x4d8] sm:$0xff]
    %v290 = vld [vmem:[#allocation5 + $0x4e0] sm:$0xff]
    %v291 = vld [vmem:[#allocation5 + $0x4e8] sm:$0xff]
    %v292 = vld [vmem:[#allocation5 + $0x4f0] sm:$0xff]
    %v293 = vld [vmem:[#allocation5 + $0x4f8] sm:$0xff]
    %v294 = vld [vmem:[#allocation5 + $0x500] sm:$0xff]
    %v295 = vld [vmem:[#allocation5 + $0x508] sm:$0xff]
    %v296 = vld [vmem:[#allocation5 + $0x510] sm:$0xff]
    %v297 = vld [vmem:[#allocation5 + $0x518] sm:$0xff]
    %v298 = vld [vmem:[#allocation5 + $0x520] sm:$0xff]
    %v299 = vld [vmem:[#allocation5 + $0x528] sm:$0xff]
    %v300 = vld [vmem:[#allocation5 + $0x530] sm:$0xff]
    %v301 = vld [vmem:[#allocation5 + $0x538] sm:$0xff]
    %v302 = vld [vmem:[#allocation5 + $0x540] sm:$0xff]
    %v303 = vld [vmem:[#allocation5 + $0x548] sm:$0xff]
    %v304 = vld [vmem:[#allocation5 + $0x550] sm:$0xff]
    %v305 = vld [vmem:[#allocation5 + $0x558] sm:$0xff]
    %v306 = vld [vmem:[#allocation5 + $0x560] sm:$0xff]
    %v307 = vld [vmem:[#allocation5 + $0x568] sm:$0xff]
    %v308 = vld [vmem:[#allocation5 + $0x570] sm:$0xff]
    %v309 = vld [vmem:[#allocation5 + $0x578] sm:$0xff]
    %v310 = vld [vmem:[#allocation5 + $0x580] sm:$0xff]
    %v311 = vld [vmem:[#allocation5 + $0x588] sm:$0xff]
    %v312 = vld [vmem:[#allocation5 + $0x590] sm:$0xff]
    %v313 = vld [vmem:[#allocation5 + $0x598] sm:$0xff]
    %v314 = vld [vmem:[#allocation5 + $0x5a0] sm:$0xff]
    %v315 = vld [vmem:[#allocation5 + $0x5a8] sm:$0xff]
    %v316 = vld [vmem:[#allocation5 + $0x5b0] sm:$0xff]
    %v317 = vld [vmem:[#allocation5 + $0x5b8] sm:$0xff]
    %v318 = vld [vmem:[#allocation5 + $0x5c0] sm:$0xff]
    %v319 = vld [vmem:[#allocation5 + $0x5c8] sm:$0xff]
    %v320 = vld [vmem:[#allocation5 + $0x5d0] sm:$0xff]
    %v321 = vld [vmem:[#allocation5 + $0x5d8] sm:$0xff]
    %v322 = vld [vmem:[#allocation5 + $0x5e0] sm:$0xff]
    %v323 = vld [vmem:[#allocation5 + $0x5e8] sm:$0xff]
    %v324 = vld [vmem:[#allocation5 + $0x5f0] sm:$0xff]
    %v325 = vld [vmem:[#allocation5 + $0x5f8] sm:$0xff]
    %v326 = vld [vmem:[#allocation5 + $0x600] sm:$0xff]
    %v327 = vld [vmem:[#allocation5 + $0x608] sm:$0xff]
    %v328 = vld [vmem:[#allocation5 + $0x610] sm:$0xff]
    %v329 = vld [vmem:[#allocation5 + $0x618] sm:$0xff]
    %v330 = vld [vmem:[%s2] sm:$0xf]
    %v332 = vlaneseq
    %v333 = vshrl.u32 %v332, 7
    %v334 = vsub.s32 0, %v333
    %v335 = vrot.slane %v330, %v334
    %v336 = vlaneseq
    %v337 = vshrl.u32 %v336, 7
    %v338 = vsub.s32 1, %v337
    %v339 = vrot.slane %v330, %v338
    %v340 = vlaneseq
    %v341 = vshrl.u32 %v340, 7
    %v342 = vsub.s32 2, %v341
    %v343 = vrot.slane %v330, %v342
    %v344 = vlaneseq
    %v345 = vshrl.u32 %v344, 7
    %v346 = vsub.s32 3, %v345
    %v347 = vrot.slane %v330, %v346
    %v548 = vunpack.c.l.b16 %v134
    %v549 = vunpack.c.h.b16 %v134
    %v550 = vunpack.c.l.b16 %v135
    %v551 = vunpack.c.h.b16 %v135
    %v552 = vunpack.c.l.b16 %v136
    %v553 = vunpack.c.h.b16 %v136
    %v554 = vunpack.c.l.b16 %v137
    %v555 = vunpack.c.h.b16 %v137
    %v556 = vunpack.c.l.b16 %v138
    %v557 = vunpack.c.h.b16 %v138
    %v558 = vunpack.c.l.b16 %v139
    %v559 = vunpack.c.h.b16 %v139
    %v560 = vunpack.c.l.b16 %v140
    %v561 = vunpack.c.h.b16 %v140
    %v562 = vunpack.c.l.b16 %v141
    %v563 = vunpack.c.h.b16 %v141
    %v564 = vunpack.c.l.b16 %v142
    %v565 = vunpack.c.h.b16 %v142
    %v566 = vunpack.c.l.b16 %v143
    %v567 = vunpack.c.h.b16 %v143
    %v568 = vunpack.c.l.b16 %v144
    %v569 = vunpack.c.h.b16 %v144
    %v570 = vunpack.c.l.b16 %v145
    %v571 = vunpack.c.h.b16 %v145
    %v572 = vunpack.c.l.b16 %v146
    %v573 = vunpack.c.h.b16 %v146
    %v574 = vunpack.c.l.b16 %v147
    %v575 = vunpack.c.h.b16 %v147
    %v576 = vunpack.c.l.b16 %v148
    %v577 = vunpack.c.h.b16 %v148
    %v578 = vunpack.c.l.b16 %v149
    %v579 = vunpack.c.h.b16 %v149
    %v580 = vunpack.c.l.b16 %v150
    %v581 = vunpack.c.h.b16 %v150
    %v582 = vunpack.c.l.b16 %v151
    %v583 = vunpack.c.h.b16 %v151
    %v584 = vunpack.c.l.b16 %v152
    %v585 = vunpack.c.h.b16 %v152
    %v586 = vunpack.c.l.b16 %v153
    %v587 = vunpack.c.h.b16 %v153
    %v588 = vunpack.c.l.b16 %v154
    %v589 = vunpack.c.h.b16 %v154
    %v590 = vunpack.c.l.b16 %v155
    %v591 = vunpack.c.h.b16 %v155
    %v592 = vunpack.c.l.b16 %v156
    %v593 = vunpack.c.h.b16 %v156
    %v594 = vunpack.c.l.b16 %v157
    %v595 = vunpack.c.h.b16 %v157
    %v596 = vunpack.c.l.b16 %v158
    %v597 = vunpack.c.h.b16 %v158
    %v598 = vunpack.c.l.b16 %v159
    %v599 = vunpack.c.h.b16 %v159
    %v600 = vunpack.c.l.b16 %v160
    %v601 = vunpack.c.h.b16 %v160
    %v602 = vunpack.c.l.b16 %v161
    %v603 = vunpack.c.h.b16 %v161
    %v604 = vunpack.c.l.b16 %v162
    %v605 = vunpack.c.h.b16 %v162
    %v606 = vunpack.c.l.b16 %v163
    %v607 = vunpack.c.h.b16 %v163
    %v608 = vunpack.c.l.b16 %v164
    %v609 = vunpack.c.h.b16 %v164
    %v610 = vunpack.c.l.b16 %v165
    %v611 = vunpack.c.h.b16 %v165
    %v612 = vunpack.c.l.b16 %v166
    %v613 = vunpack.c.h.b16 %v166
    %v614 = vunpack.c.l.b16 %v167
    %v615 = vunpack.c.h.b16 %v167
    %v616 = vunpack.c.l.b16 %v168
    %v617 = vunpack.c.h.b16 %v168
    %v618 = vunpack.c.l.b16 %v169
    %v619 = vunpack.c.h.b16 %v169
    %v620 = vunpack.c.l.b16 %v170
    %v621 = vunpack.c.h.b16 %v170
    %v622 = vunpack.c.l.b16 %v171
    %v623 = vunpack.c.h.b16 %v171
    %v624 = vunpack.c.l.b16 %v172
    %v625 = vunpack.c.h.b16 %v172
    %v626 = vunpack.c.l.b16 %v173
    %v627 = vunpack.c.h.b16 %v173
    %v628 = vunpack.c.l.b16 %v174
    %v629 = vunpack.c.h.b16 %v174
    %v630 = vunpack.c.l.b16 %v175
    %v631 = vunpack.c.h.b16 %v175
    %v632 = vunpack.c.l.b16 %v176
    %v633 = vunpack.c.h.b16 %v176
    %v634 = vunpack.c.l.b16 %v177
    %v635 = vunpack.c.h.b16 %v177
    %v636 = vunpack.c.l.b16 %v178
    %v637 = vunpack.c.h.b16 %v178
    %v638 = vunpack.c.l.b16 %v179
    %v639 = vunpack.c.h.b16 %v179
    %v640 = vunpack.c.l.b16 %v180
    %v641 = vunpack.c.h.b16 %v180
    %v642 = vunpack.c.l.b16 %v181
    %v643 = vunpack.c.h.b16 %v181
    %v644 = vunpack.c.l.b16 %v182
    %v645 = vunpack.c.h.b16 %v182
    %v646 = vunpack.c.l.b16 %v183
    %v647 = vunpack.c.h.b16 %v183
    %v648 = vunpack.c.l.b16 %v184
    %v649 = vunpack.c.h.b16 %v184
    %v650 = vunpack.c.l.b16 %v185
    %v651 = vunpack.c.h.b16 %v185
    %v652 = vunpack.c.l.b16 %v186
    %v653 = vunpack.c.h.b16 %v186
    %v654 = vunpack.c.l.b16 %v187
    %v655 = vunpack.c.h.b16 %v187
    %v656 = vunpack.c.l.b16 %v188
    %v657 = vunpack.c.h.b16 %v188
    %v658 = vunpack.c.l.b16 %v189
    %v659 = vunpack.c.h.b16 %v189
    %v660 = vunpack.c.l.b16 %v190
    %v661 = vunpack.c.h.b16 %v190
    %v662 = vunpack.c.l.b16 %v191
    %v663 = vunpack.c.h.b16 %v191
    %v664 = vunpack.c.l.b16 %v192
    %v665 = vunpack.c.h.b16 %v192
    %v666 = vunpack.c.l.b16 %v193
    %v667 = vunpack.c.h.b16 %v193
    %v668 = vunpack.c.l.b16 %v194
    %v669 = vunpack.c.h.b16 %v194
    %v670 = vunpack.c.l.b16 %v195
    %v671 = vunpack.c.h.b16 %v195
    %v672 = vunpack.c.l.b16 %v196
    %v673 = vunpack.c.h.b16 %v196
    %v674 = vunpack.c.l.b16 %v197
    %v675 = vunpack.c.h.b16 %v197
    %v676 = vunpack.c.l.b16 %v198
    %v677 = vunpack.c.h.b16 %v198
    %v678 = vunpack.c.l.b16 %v199
    %v679 = vunpack.c.h.b16 %v199
    %v680 = vunpack.c.l.b16 %v200
    %v681 = vunpack.c.h.b16 %v200
    %v682 = vunpack.c.l.b16 %v201
    %v683 = vunpack.c.h.b16 %v201
    %v684 = vunpack.c.l.b16 %v202
    %v685 = vunpack.c.h.b16 %v202
    %v686 = vunpack.c.l.b16 %v203
    %v687 = vunpack.c.h.b16 %v203
    %v688 = vunpack.c.l.b16 %v204
    %v689 = vunpack.c.h.b16 %v204
    %v690 = vunpack.c.l.b16 %v205
    %v691 = vunpack.c.h.b16 %v205
    %v692 = vunpack.c.l.b16 %v206
    %v693 = vunpack.c.h.b16 %v206
    %v694 = vunpack.c.l.b16 %v207
    %v695 = vunpack.c.h.b16 %v207
    %v696 = vunpack.c.l.b16 %v208
    %v697 = vunpack.c.h.b16 %v208
    %v698 = vunpack.c.l.b16 %v209
    %v699 = vunpack.c.h.b16 %v209
    %v700 = vunpack.c.l.b16 %v210
    %v701 = vunpack.c.h.b16 %v210
    %v702 = vunpack.c.l.b16 %v211
    %v703 = vunpack.c.h.b16 %v211
    %v704 = vunpack.c.l.b16 %v212
    %v705 = vunpack.c.h.b16 %v212
    %v706 = vunpack.c.l.b16 %v213
    %v707 = vunpack.c.h.b16 %v213
    %v708 = vunpack.c.l.b16 %v214
    %v709 = vunpack.c.h.b16 %v214
    %v710 = vunpack.c.l.b16 %v215
    %v711 = vunpack.c.h.b16 %v215
    %v712 = vunpack.c.l.b16 %v216
    %v713 = vunpack.c.h.b16 %v216
    %v714 = vunpack.c.l.b16 %v217
    %v715 = vunpack.c.h.b16 %v217
    %v716 = vunpack.c.l.b16 %v218
    %v717 = vunpack.c.h.b16 %v218
    %v718 = vunpack.c.l.b16 %v219
    %v719 = vunpack.c.h.b16 %v219
    %v720 = vunpack.c.l.b16 %v220
    %v721 = vunpack.c.h.b16 %v220
    %v722 = vunpack.c.l.b16 %v221
    %v723 = vunpack.c.h.b16 %v221
    %v724 = vunpack.c.l.b16 %v222
    %v725 = vunpack.c.h.b16 %v222
    %v726 = vunpack.c.l.b16 %v223
    %v727 = vunpack.c.h.b16 %v223
    %v728 = vunpack.c.l.b16 %v224
    %v729 = vunpack.c.h.b16 %v224
    %v730 = vunpack.c.l.b16 %v225
    %v731 = vunpack.c.h.b16 %v225
    %v732 = vunpack.c.l.b16 %v226
    %v733 = vunpack.c.h.b16 %v226
    %v734 = vunpack.c.l.b16 %v227
    %v735 = vunpack.c.h.b16 %v227
    %v736 = vunpack.c.l.b16 %v228
    %v737 = vunpack.c.h.b16 %v228
    %v738 = vunpack.c.l.b16 %v229
    %v739 = vunpack.c.h.b16 %v229
    %v740 = vunpack.c.l.b16 %v230
    %v741 = vunpack.c.h.b16 %v230
    %v742 = vunpack.c.l.b16 %v231
    %v743 = vunpack.c.h.b16 %v231
    %v744 = vunpack.c.l.b16 %v232
    %v745 = vunpack.c.h.b16 %v232
    %v746 = vunpack.c.l.b16 %v233
    %v747 = vunpack.c.h.b16 %v233
    %v748 = vunpack.c.l.b16 %v234
    %v749 = vunpack.c.h.b16 %v234
    %v750 = vunpack.c.l.b16 %v235
    %v751 = vunpack.c.h.b16 %v235
    %v752 = vunpack.c.l.b16 %v236
    %v753 = vunpack.c.h.b16 %v236
    %v754 = vunpack.c.l.b16 %v237
    %v755 = vunpack.c.h.b16 %v237
    %v756 = vunpack.c.l.b16 %v238
    %v757 = vunpack.c.h.b16 %v238
    %v758 = vunpack.c.l.b16 %v239
    %v759 = vunpack.c.h.b16 %v239
    %v760 = vunpack.c.l.b16 %v240
    %v761 = vunpack.c.h.b16 %v240
    %v762 = vunpack.c.l.b16 %v241
    %v763 = vunpack.c.h.b16 %v241
    %v764 = vunpack.c.l.b16 %v242
    %v765 = vunpack.c.h.b16 %v242
    %v766 = vunpack.c.l.b16 %v243
    %v767 = vunpack.c.h.b16 %v243
    %v768 = vunpack.c.l.b16 %v244
    %v769 = vunpack.c.h.b16 %v244
    %v770 = vunpack.c.l.b16 %v245
    %v771 = vunpack.c.h.b16 %v245
    %v772 = vunpack.c.l.b16 %v246
    %v773 = vunpack.c.h.b16 %v246
    %v774 = vunpack.c.l.b16 %v247
    %v775 = vunpack.c.h.b16 %v247
    %v776 = vunpack.c.l.b16 %v248
    %v777 = vunpack.c.h.b16 %v248
    %v778 = vunpack.c.l.b16 %v249
    %v779 = vunpack.c.h.b16 %v249
    %v780 = vunpack.c.l.b16 %v250
    %v781 = vunpack.c.h.b16 %v250
    %v782 = vunpack.c.l.b16 %v251
    %v783 = vunpack.c.h.b16 %v251
    %v784 = vunpack.c.l.b16 %v252
    %v785 = vunpack.c.h.b16 %v252
    %v786 = vunpack.c.l.b16 %v253
    %v787 = vunpack.c.h.b16 %v253
    %v788 = vunpack.c.l.b16 %v254
    %v789 = vunpack.c.h.b16 %v254
    %v790 = vunpack.c.l.b16 %v255
    %v791 = vunpack.c.h.b16 %v255
    %v792 = vunpack.c.l.b16 %v256
    %v793 = vunpack.c.h.b16 %v256
    %v794 = vunpack.c.l.b16 %v257
    %v795 = vunpack.c.h.b16 %v257
    %v796 = vunpack.c.l.b16 %v258
    %v797 = vunpack.c.h.b16 %v258
    %v798 = vunpack.c.l.b16 %v259
    %v799 = vunpack.c.h.b16 %v259
    %v800 = vunpack.c.l.b16 %v260
    %v801 = vunpack.c.h.b16 %v260
    %v802 = vunpack.c.l.b16 %v261
    %v803 = vunpack.c.h.b16 %v261
    %v804 = vunpack.c.l.b16 %v262
    %v805 = vunpack.c.h.b16 %v262
    %v806 = vunpack.c.l.b16 %v263
    %v807 = vunpack.c.h.b16 %v263
    %v808 = vunpack.c.l.b16 %v264
    %v809 = vunpack.c.h.b16 %v264
    %v810 = vunpack.c.l.b16 %v265
    %v811 = vunpack.c.h.b16 %v265
    %v812 = vunpack.c.l.b16 %v266
    %v813 = vunpack.c.h.b16 %v266
    %v814 = vunpack.c.l.b16 %v267
    %v815 = vunpack.c.h.b16 %v267
    %v816 = vunpack.c.l.b16 %v268
    %v817 = vunpack.c.h.b16 %v268
    %v818 = vunpack.c.l.b16 %v269
    %v819 = vunpack.c.h.b16 %v269
    %v820 = vunpack.c.l.b16 %v270
    %v821 = vunpack.c.h.b16 %v270
    %v822 = vunpack.c.l.b16 %v271
    %v823 = vunpack.c.h.b16 %v271
    %v824 = vunpack.c.l.b16 %v272
    %v825 = vunpack.c.h.b16 %v272
    %v826 = vunpack.c.l.b16 %v273
    %v827 = vunpack.c.h.b16 %v273
    %v828 = vunpack.c.l.b16 %v274
    %v829 = vunpack.c.h.b16 %v274
    %v830 = vunpack.c.l.b16 %v275
    %v831 = vunpack.c.h.b16 %v275
    %v832 = vunpack.c.l.b16 %v276
    %v833 = vunpack.c.h.b16 %v276
    %v834 = vunpack.c.l.b16 %v277
    %v835 = vunpack.c.h.b16 %v277
    %v836 = vunpack.c.l.b16 %v278
    %v837 = vunpack.c.h.b16 %v278
    %v838 = vunpack.c.l.b16 %v279
    %v839 = vunpack.c.h.b16 %v279
    %v840 = vunpack.c.l.b16 %v280
    %v841 = vunpack.c.h.b16 %v280
    %v842 = vunpack.c.l.b16 %v281
    %v843 = vunpack.c.h.b16 %v281
    %v844 = vunpack.c.l.b16 %v282
    %v845 = vunpack.c.h.b16 %v282
    %v846 = vunpack.c.l.b16 %v283
    %v847 = vunpack.c.h.b16 %v283
    %v848 = vunpack.c.l.b16 %v284
    %v849 = vunpack.c.h.b16 %v284
    %v850 = vunpack.c.l.b16 %v285
    %v851 = vunpack.c.h.b16 %v285
    %v852 = vunpack.c.l.b16 %v286
    %v853 = vunpack.c.h.b16 %v286
    %v854 = vunpack.c.l.b16 %v287
    %v855 = vunpack.c.h.b16 %v287
    %v856 = vunpack.c.l.b16 %v288
    %v857 = vunpack.c.h.b16 %v288
    %v858 = vunpack.c.l.b16 %v289
    %v859 = vunpack.c.h.b16 %v289
    %v860 = vunpack.c.l.b16 %v290
    %v861 = vunpack.c.h.b16 %v290
    %v862 = vunpack.c.l.b16 %v291
    %v863 = vunpack.c.h.b16 %v291
    %v864 = vunpack.c.l.b16 %v292
    %v865 = vunpack.c.h.b16 %v292
    %v866 = vunpack.c.l.b16 %v293
    %v867 = vunpack.c.h.b16 %v293
    %v868 = vunpack.c.l.b16 %v294
    %v869 = vunpack.c.h.b16 %v294
    %v870 = vunpack.c.l.b16 %v295
    %v871 = vunpack.c.h.b16 %v295
    %v872 = vunpack.c.l.b16 %v296
    %v873 = vunpack.c.h.b16 %v296
    %v874 = vunpack.c.l.b16 %v297
    %v875 = vunpack.c.h.b16 %v297
    %v876 = vunpack.c.l.b16 %v298
    %v877 = vunpack.c.h.b16 %v298
    %v878 = vunpack.c.l.b16 %v299
    %v879 = vunpack.c.h.b16 %v299
    %v880 = vunpack.c.l.b16 %v300
    %v881 = vunpack.c.h.b16 %v300
    %v882 = vunpack.c.l.b16 %v301
    %v883 = vunpack.c.h.b16 %v301
    %v884 = vunpack.c.l.b16 %v302
    %v885 = vunpack.c.h.b16 %v302
    %v886 = vunpack.c.l.b16 %v303
    %v887 = vunpack.c.h.b16 %v303
    %v888 = vunpack.c.l.b16 %v304
    %v889 = vunpack.c.h.b16 %v304
    %v890 = vunpack.c.l.b16 %v305
    %v891 = vunpack.c.h.b16 %v305
    %v892 = vunpack.c.l.b16 %v306
    %v893 = vunpack.c.h.b16 %v306
    %v894 = vunpack.c.l.b16 %v307
    %v895 = vunpack.c.h.b16 %v307
    %v896 = vunpack.c.l.b16 %v308
    %v897 = vunpack.c.h.b16 %v308
    %v898 = vunpack.c.l.b16 %v309
    %v899 = vunpack.c.h.b16 %v309
    %v900 = vunpack.c.l.b16 %v310
    %v901 = vunpack.c.h.b16 %v310
    %v902 = vunpack.c.l.b16 %v311
    %v903 = vunpack.c.h.b16 %v311
    %v904 = vunpack.c.l.b16 %v312
    %v905 = vunpack.c.h.b16 %v312
    %v906 = vunpack.c.l.b16 %v313
    %v907 = vunpack.c.h.b16 %v313
    %v908 = vunpack.c.l.b16 %v314
    %v909 = vunpack.c.h.b16 %v314
    %v910 = vunpack.c.l.b16 %v315
    %v911 = vunpack.c.h.b16 %v315
    %v912 = vunpack.c.l.b16 %v316
    %v913 = vunpack.c.h.b16 %v316
    %v914 = vunpack.c.l.b16 %v317
    %v915 = vunpack.c.h.b16 %v317
    %v916 = vunpack.c.l.b16 %v318
    %v917 = vunpack.c.h.b16 %v318
    %v918 = vunpack.c.l.b16 %v319
    %v919 = vunpack.c.h.b16 %v319
    %v920 = vunpack.c.l.b16 %v320
    %v921 = vunpack.c.h.b16 %v320
    %v922 = vunpack.c.l.b16 %v321
    %v923 = vunpack.c.h.b16 %v321
    %v924 = vunpack.c.l.b16 %v322
    %v925 = vunpack.c.h.b16 %v322
    %v926 = vunpack.c.l.b16 %v323
    %v927 = vunpack.c.h.b16 %v323
    %v928 = vunpack.c.l.b16 %v324
    %v929 = vunpack.c.h.b16 %v324
    %v930 = vunpack.c.l.b16 %v325
    %v931 = vunpack.c.h.b16 %v325
    %v932 = vunpack.c.l.b16 %v326
    %v933 = vunpack.c.h.b16 %v326
    %v934 = vunpack.c.l.b16 %v327
    %v935 = vunpack.c.h.b16 %v327
    %v936 = vunpack.c.l.b16 %v328
    %v937 = vunpack.c.h.b16 %v328
    %v938 = vunpack.c.l.b16 %v329
    %v939 = vunpack.c.h.b16 %v329
    %v940 = vpack.c.b16 %v552, %v548
    %v941 = vpack.c.b16 %v553, %v549
    %v942 = vpack.c.b16 %v554, %v550
    %v943 = vpack.c.b16 %v555, %v551
    %v944 = vpack.c.b16 %v560, %v556
    %v945 = vpack.c.b16 %v561, %v557
    %v946 = vpack.c.b16 %v562, %v558
    %v947 = vpack.c.b16 %v563, %v559
    %v948 = vpack.c.b16 %v568, %v564
    %v949 = vpack.c.b16 %v569, %v565
    %v950 = vpack.c.b16 %v570, %v566
    %v951 = vpack.c.b16 %v571, %v567
    %v952 = vpack.c.b16 %v576, %v572
    %v953 = vpack.c.b16 %v577, %v573
    %v954 = vpack.c.b16 %v578, %v574
    %v955 = vpack.c.b16 %v579, %v575
    %v956 = vpack.c.b16 %v584, %v580
    %v957 = vpack.c.b16 %v585, %v581
    %v958 = vpack.c.b16 %v586, %v582
    %v959 = vpack.c.b16 %v587, %v583
    %v960 = vpack.c.b16 %v592, %v588
    %v961 = vpack.c.b16 %v593, %v589
    %v962 = vpack.c.b16 %v594, %v590
    %v963 = vpack.c.b16 %v595, %v591
    %v964 = vpack.c.b16 %v600, %v596
    %v965 = vpack.c.b16 %v601, %v597
    %v966 = vpack.c.b16 %v602, %v598
    %v967 = vpack.c.b16 %v603, %v599
    %v968 = vpack.c.b16 %v608, %v604
    %v969 = vpack.c.b16 %v609, %v605
    %v970 = vpack.c.b16 %v610, %v606
    %v971 = vpack.c.b16 %v611, %v607
    %v972 = vpack.c.b16 %v616, %v612
    %v973 = vpack.c.b16 %v617, %v613
    %v974 = vpack.c.b16 %v618, %v614
    %v975 = vpack.c.b16 %v619, %v615
    %v976 = vpack.c.b16 %v624, %v620
    %v977 = vpack.c.b16 %v625, %v621
    %v978 = vpack.c.b16 %v626, %v622
    %v979 = vpack.c.b16 %v627, %v623
    %v980 = vpack.c.b16 %v632, %v628
    %v981 = vpack.c.b16 %v633, %v629
    %v982 = vpack.c.b16 %v634, %v630
    %v983 = vpack.c.b16 %v635, %v631
    %v984 = vpack.c.b16 %v640, %v636
    %v985 = vpack.c.b16 %v641, %v637
    %v986 = vpack.c.b16 %v642, %v638
    %v987 = vpack.c.b16 %v643, %v639
    %v988 = vpack.c.b16 %v648, %v644
    %v989 = vpack.c.b16 %v649, %v645
    %v990 = vpack.c.b16 %v650, %v646
    %v991 = vpack.c.b16 %v651, %v647
    %v992 = vpack.c.b16 %v656, %v652
    %v993 = vpack.c.b16 %v657, %v653
    %v994 = vpack.c.b16 %v658, %v654
    %v995 = vpack.c.b16 %v659, %v655
    %v996 = vpack.c.b16 %v664, %v660
    %v997 = vpack.c.b16 %v665, %v661
    %v998 = vpack.c.b16 %v666, %v662
    %v999 = vpack.c.b16 %v667, %v663
    %v1000 = vpack.c.b16 %v672, %v668
    %v1001 = vpack.c.b16 %v673, %v669
    %v1002 = vpack.c.b16 %v674, %v670
    %v1003 = vpack.c.b16 %v675, %v671
    %v1004 = vpack.c.b16 %v680, %v676
    %v1005 = vpack.c.b16 %v681, %v677
    %v1006 = vpack.c.b16 %v682, %v678
    %v1007 = vpack.c.b16 %v683, %v679
    %v1008 = vpack.c.b16 %v688, %v684
    %v1009 = vpack.c.b16 %v689, %v685
    %v1010 = vpack.c.b16 %v690, %v686
    %v1011 = vpack.c.b16 %v691, %v687
    %v1012 = vpack.c.b16 %v696, %v692
    %v1013 = vpack.c.b16 %v697, %v693
    %v1014 = vpack.c.b16 %v698, %v694
    %v1015 = vpack.c.b16 %v699, %v695
    %v1016 = vpack.c.b16 %v704, %v700
    %v1017 = vpack.c.b16 %v705, %v701
    %v1018 = vpack.c.b16 %v706, %v702
    %v1019 = vpack.c.b16 %v707, %v703
    %v1020 = vpack.c.b16 %v712, %v708
    %v1021 = vpack.c.b16 %v713, %v709
    %v1022 = vpack.c.b16 %v714, %v710
    %v1023 = vpack.c.b16 %v715, %v711
    %v1024 = vpack.c.b16 %v720, %v716
    %v1025 = vpack.c.b16 %v721, %v717
    %v1026 = vpack.c.b16 %v722, %v718
    %v1027 = vpack.c.b16 %v723, %v719
    %v1028 = vpack.c.b16 %v728, %v724
    %v1029 = vpack.c.b16 %v729, %v725
    %v1030 = vpack.c.b16 %v730, %v726
    %v1031 = vpack.c.b16 %v731, %v727
    %v1032 = vpack.c.b16 %v736, %v732
    %v1033 = vpack.c.b16 %v737, %v733
    %v1034 = vpack.c.b16 %v738, %v734
    %v1035 = vpack.c.b16 %v739, %v735
    %v1036 = vpack.c.b16 %v744, %v740
    %v1037 = vpack.c.b16 %v745, %v741
    %v1038 = vpack.c.b16 %v746, %v742
    %v1039 = vpack.c.b16 %v747, %v743
    %v1040 = vpack.c.b16 %v752, %v748
    %v1041 = vpack.c.b16 %v753, %v749
    %v1042 = vpack.c.b16 %v754, %v750
    %v1043 = vpack.c.b16 %v755, %v751
    %v1044 = vpack.c.b16 %v760, %v756
    %v1045 = vpack.c.b16 %v761, %v757
    %v1046 = vpack.c.b16 %v762, %v758
    %v1047 = vpack.c.b16 %v763, %v759
    %v1048 = vpack.c.b16 %v768, %v764
    %v1049 = vpack.c.b16 %v769, %v765
    %v1050 = vpack.c.b16 %v770, %v766
    %v1051 = vpack.c.b16 %v771, %v767
    %v1052 = vpack.c.b16 %v776, %v772
    %v1053 = vpack.c.b16 %v777, %v773
    %v1054 = vpack.c.b16 %v778, %v774
    %v1055 = vpack.c.b16 %v779, %v775
    %v1056 = vpack.c.b16 %v784, %v780
    %v1057 = vpack.c.b16 %v785, %v781
    %v1058 = vpack.c.b16 %v786, %v782
    %v1059 = vpack.c.b16 %v787, %v783
    %v1060 = vpack.c.b16 %v792, %v788
    %v1061 = vpack.c.b16 %v793, %v789
    %v1062 = vpack.c.b16 %v794, %v790
    %v1063 = vpack.c.b16 %v795, %v791
    %v1064 = vpack.c.b16 %v800, %v796
    %v1065 = vpack.c.b16 %v801, %v797
    %v1066 = vpack.c.b16 %v802, %v798
    %v1067 = vpack.c.b16 %v803, %v799
    %v1068 = vpack.c.b16 %v808, %v804
    %v1069 = vpack.c.b16 %v809, %v805
    %v1070 = vpack.c.b16 %v810, %v806
    %v1071 = vpack.c.b16 %v811, %v807
    %v1072 = vpack.c.b16 %v816, %v812
    %v1073 = vpack.c.b16 %v817, %v813
    %v1074 = vpack.c.b16 %v818, %v814
    %v1075 = vpack.c.b16 %v819, %v815
    %v1076 = vpack.c.b16 %v824, %v820
    %v1077 = vpack.c.b16 %v825, %v821
    %v1078 = vpack.c.b16 %v826, %v822
    %v1079 = vpack.c.b16 %v827, %v823
    %v1080 = vpack.c.b16 %v832, %v828
    %v1081 = vpack.c.b16 %v833, %v829
    %v1082 = vpack.c.b16 %v834, %v830
    %v1083 = vpack.c.b16 %v835, %v831
    %v1084 = vpack.c.b16 %v840, %v836
    %v1085 = vpack.c.b16 %v841, %v837
    %v1086 = vpack.c.b16 %v842, %v838
    %v1087 = vpack.c.b16 %v843, %v839
    %v1088 = vpack.c.b16 %v848, %v844
    %v1089 = vpack.c.b16 %v849, %v845
    %v1090 = vpack.c.b16 %v850, %v846
    %v1091 = vpack.c.b16 %v851, %v847
    %v1092 = vpack.c.b16 %v856, %v852
    %v1093 = vpack.c.b16 %v857, %v853
    %v1094 = vpack.c.b16 %v858, %v854
    %v1095 = vpack.c.b16 %v859, %v855
    %v1096 = vpack.c.b16 %v864, %v860
    %v1097 = vpack.c.b16 %v865, %v861
    %v1098 = vpack.c.b16 %v866, %v862
    %v1099 = vpack.c.b16 %v867, %v863
    %v1100 = vpack.c.b16 %v872, %v868
    %v1101 = vpack.c.b16 %v873, %v869
    %v1102 = vpack.c.b16 %v874, %v870
    %v1103 = vpack.c.b16 %v875, %v871
    %v1104 = vpack.c.b16 %v880, %v876
    %v1105 = vpack.c.b16 %v881, %v877
    %v1106 = vpack.c.b16 %v882, %v878
    %v1107 = vpack.c.b16 %v883, %v879
    %v1108 = vpack.c.b16 %v888, %v884
    %v1109 = vpack.c.b16 %v889, %v885
    %v1110 = vpack.c.b16 %v890, %v886
    %v1111 = vpack.c.b16 %v891, %v887
    %v1112 = vpack.c.b16 %v896, %v892
    %v1113 = vpack.c.b16 %v897, %v893
    %v1114 = vpack.c.b16 %v898, %v894
    %v1115 = vpack.c.b16 %v899, %v895
    %v1116 = vpack.c.b16 %v904, %v900
    %v1117 = vpack.c.b16 %v905, %v901
    %v1118 = vpack.c.b16 %v906, %v902
    %v1119 = vpack.c.b16 %v907, %v903
    %v1120 = vpack.c.b16 %v912, %v908
    %v1121 = vpack.c.b16 %v913, %v909
    %v1122 = vpack.c.b16 %v914, %v910
    %v1123 = vpack.c.b16 %v915, %v911
    %v1124 = vpack.c.b16 %v920, %v916
    %v1125 = vpack.c.b16 %v921, %v917
    %v1126 = vpack.c.b16 %v922, %v918
    %v1127 = vpack.c.b16 %v923, %v919
    %v1128 = vpack.c.b16 %v928, %v924
    %v1129 = vpack.c.b16 %v929, %v925
    %v1130 = vpack.c.b16 %v930, %v926
    %v1131 = vpack.c.b16 %v931, %v927
    %v1132 = vpack.c.b16 %v936, %v932
    %v1133 = vpack.c.b16 %v937, %v933
    %v1134 = vpack.c.b16 %v938, %v934
    %v1135 = vpack.c.b16 %v939, %v935
    %vm1332 = vcmask 130048
    %v1334 = vsel %vm1332, %v133, 0
    %1336 = vmatprep.subr.bf16.mxu0 %v941
    %1337 = vmatpush1.bf16.msra.mxu0 %v940
    %1338 = vmatprep.subr.bf16.mxu0 %v945
    %1339 = vmatpush1.bf16.msra.mxu0 %v944
    %1340 = vmatprep.subr.bf16.mxu0 %v949
    %1341 = vmatpush1.bf16.msra.mxu0 %v948
    %1342 = vmatprep.subr.bf16.mxu0 %v953
    %1343 = vmatpush1.bf16.msra.mxu0 %v952
    %1344 = vmatprep.subr.bf16.mxu0 %v957
    %1345 = vmatpush1.bf16.msra.mxu0 %v956
    %1346 = vmatprep.subr.bf16.mxu0 %v961
    %1347 = vmatpush1.bf16.msra.mxu0 %v960
    %1348 = vmatprep.subr.bf16.mxu0 %v965
    %1349 = vmatpush1.bf16.msra.mxu0 %v964
    %1350 = vmatprep.subr.bf16.mxu0 %v969
    %1351 = vmatpush1.bf16.msra.mxu0 %v968
    %1352 = vmatprep.subr.bf16.mxu0 %v973
    %1353 = vmatpush1.bf16.msra.mxu0 %v972
    %1354 = vmatprep.subr.bf16.mxu0 %v977
    %1355 = vmatpush1.bf16.msra.mxu0 %v976
    %1356 = vmatprep.subr.bf16.mxu0 %v981
    %1357 = vmatpush1.bf16.msra.mxu0 %v980
    %1358 = vmatprep.subr.bf16.mxu0 %v985
    %1359 = vmatpush1.bf16.msra.mxu0 %v984
    %1360 = vmatprep.subr.bf16.mxu0 %v989
    %1361 = vmatpush1.bf16.msra.mxu0 %v988
    %1362 = vmatprep.subr.bf16.mxu0 %v993
    %1363 = vmatpush1.bf16.msra.mxu0 %v992
    %1364 = vmatprep.subr.bf16.mxu0 %v997
    %1365 = vmatpush1.bf16.msra.mxu0 %v996
    %1366 = vmatprep.subr.bf16.mxu0 %v1001
    %1367 = vmatpush1.bf16.msra.mxu0 %v1000
    %1368 = vmatprep.mubr.bf16.mxu0 %v128
    %1369 = vmatmul.mubr.bf16.gmra.mrb[0].mxu0 %v127
    %v1370 = vpop.f32.mrb[0].mxu0
    %v1371 = vadd.f32 %v335, %v1370
    %v1372 = vpop.f32.mrb[0].mxu0
    %v1373 = vadd.f32 %v339, %v1372
    %v1374 = vpop.f32.mrb[0].mxu0
    %v1375 = vpop.f32.mrb[0].mxu0
    %1376 = vdwg.mxu0
    %1377 = vmatprep.subr.bf16.mxu0 %v1005
    %1378 = vmatpush1.bf16.msra.mxu0 %v1004
    %1379 = vmatprep.subr.bf16.mxu0 %v1009
    %1380 = vmatpush1.bf16.msra.mxu0 %v1008
    %1381 = vmatprep.subr.bf16.mxu0 %v1013
    %1382 = vmatpush1.bf16.msra.mxu0 %v1012
    %1383 = vmatprep.subr.bf16.mxu0 %v1017
    %1384 = vmatpush1.bf16.msra.mxu0 %v1016
    %1385 = vmatprep.subr.bf16.mxu0 %v1021
    %1386 = vmatpush1.bf16.msra.mxu0 %v1020
    %1387 = vmatprep.subr.bf16.mxu0 %v1025
    %1388 = vmatpush1.bf16.msra.mxu0 %v1024
    %1389 = vmatprep.subr.bf16.mxu0 %v1029
    %1390 = vmatpush1.bf16.msra.mxu0 %v1028
    %1391 = vmatprep.subr.bf16.mxu0 %v1033
    %1392 = vmatpush1.bf16.msra.mxu0 %v1032
    %1393 = vmatprep.subr.bf16.mxu0 %v1037
    %1394 = vmatpush1.bf16.msra.mxu0 %v1036
    %1395 = vmatprep.subr.bf16.mxu0 %v1041
    %1396 = vmatpush1.bf16.msra.mxu0 %v1040
    %1397 = vmatprep.subr.bf16.mxu0 %v1045
    %1398 = vmatpush1.bf16.msra.mxu0 %v1044
    %1399 = vmatprep.subr.bf16.mxu0 %v1049
    %1400 = vmatpush1.bf16.msra.mxu0 %v1048
    %1401 = vmatprep.subr.bf16.mxu0 %v1053
    %1402 = vmatpush1.bf16.msra.mxu0 %v1052
    %1403 = vmatprep.subr.bf16.mxu0 %v1057
    %1404 = vmatpush1.bf16.msra.mxu0 %v1056
    %1405 = vmatprep.subr.bf16.mxu0 %v1061
    %1406 = vmatpush1.bf16.msra.mxu0 %v1060
    %1407 = vmatprep.subr.bf16.mxu0 %v1065
    %1408 = vmatpush1.bf16.msra.mxu0 %v1064
    %1409 = vmatprep.mubr.bf16.mxu0 %v130
    %1410 = vmatmul.mubr.bf16.gmra.mrb[0].mxu0 %v129
    %v1411 = vpop.f32.mrb[0].mxu0
    %v1412 = vadd.f32 %v1371, %v1411
    %v1413 = vpop.f32.mrb[0].mxu0
    %v1414 = vadd.f32 %v1373, %v1413
    %v1415 = vpop.f32.mrb[0].mxu0
    %v1416 = vpop.f32.mrb[0].mxu0
    %1417 = vdwg.mxu0
    %1418 = vmatprep.subr.bf16.mxu0 %v1069
    %1419 = vmatpush1.bf16.msra.mxu0 %v1068
    %1420 = vmatprep.subr.bf16.mxu0 %v1073
    %1421 = vmatpush1.bf16.msra.mxu0 %v1072
    %1422 = vmatprep.subr.bf16.mxu0 %v1077
    %1423 = vmatpush1.bf16.msra.mxu0 %v1076
    %1424 = vmatprep.subr.bf16.mxu0 %v1081
    %1425 = vmatpush1.bf16.msra.mxu0 %v1080
    %1426 = vmatprep.subr.bf16.mxu0 %v1085
    %1427 = vmatpush1.bf16.msra.mxu0 %v1084
    %1428 = vmatprep.subr.bf16.mxu0 %v1089
    %1429 = vmatpush1.bf16.msra.mxu0 %v1088
    %1430 = vmatprep.subr.bf16.mxu0 %v1093
    %1431 = vmatpush1.bf16.msra.mxu0 %v1092
    %1432 = vmatprep.subr.bf16.mxu0 %v1097
    %1433 = vmatpush1.bf16.msra.mxu0 %v1096
    %1434 = vmatprep.subr.bf16.mxu0 %v1101
    %1435 = vmatpush1.bf16.msra.mxu0 %v1100
    %1436 = vmatprep.subr.bf16.mxu0 %v1105
    %1437 = vmatpush1.bf16.msra.mxu0 %v1104
    %1438 = vmatprep.subr.bf16.mxu0 %v1109
    %1439 = vmatpush1.bf16.msra.mxu0 %v1108
    %1440 = vmatprep.subr.bf16.mxu0 %v1113
    %1441 = vmatpush1.bf16.msra.mxu0 %v1112
    %1442 = vmatprep.subr.bf16.mxu0 %v1117
    %1443 = vmatpush1.bf16.msra.mxu0 %v1116
    %1444 = vmatprep.subr.bf16.mxu0 %v1121
    %1445 = vmatpush1.bf16.msra.mxu0 %v1120
    %1446 = vmatprep.subr.bf16.mxu0 %v1125
    %1447 = vmatpush1.bf16.msra.mxu0 %v1124
    %1448 = vmatprep.subr.bf16.mxu0 %v1129
    %1449 = vmatpush1.bf16.msra.mxu0 %v1128
    %1450 = vmatprep.mubr.bf16.mxu0 %v132
    %1451 = vmatmul.mubr.bf16.gmra.mrb[0].mxu0 %v131
    %v1452 = vpop.f32.mrb[0].mxu0
    %v1453 = vadd.f32 %v1412, %v1452
    %v1454 = vpop.f32.mrb[0].mxu0
    %v1455 = vadd.f32 %v1414, %v1454
    %v1456 = vpop.f32.mrb[0].mxu0
    %v1457 = vpop.f32.mrb[0].mxu0
    %1458 = vdwg.mxu0
    %1459 = vmatprep.subr.bf16.mxu0 %v1133
    %1460 = vmatpush1.bf16.msra.mxu0 %v1132
    %1461 = vmatprep.subr.bf16.mxu0 0
    %1462 = vmatpush1.bf16.msra.mxu0 0
    %1463 = vmatprep.subr.bf16.mxu0 0
    %1464 = vmatpush1.bf16.msra.mxu0 0
    %1465 = vmatprep.subr.bf16.mxu0 0
    %1466 = vmatpush1.bf16.msra.mxu0 0
    %1467 = vmatprep.subr.bf16.mxu0 0
    %1468 = vmatpush1.bf16.msra.mxu0 0
    %1469 = vmatprep.subr.bf16.mxu0 0
    %1470 = vmatpush1.bf16.msra.mxu0 0
    %1471 = vmatprep.subr.bf16.mxu0 0
    %1472 = vmatpush1.bf16.msra.mxu0 0
    %1473 = vmatprep.subr.bf16.mxu0 0
    %1474 = vmatpush1.bf16.msra.mxu0 0
    %1475 = vmatprep.subr.bf16.mxu0 0
    %1476 = vmatpush1.bf16.msra.mxu0 0
    %1477 = vmatprep.subr.bf16.mxu0 0
    %1478 = vmatpush1.bf16.msra.mxu0 0
    %1479 = vmatprep.subr.bf16.mxu0 0
    %1480 = vmatpush1.bf16.msra.mxu0 0
    %1481 = vmatprep.subr.bf16.mxu0 0
    %1482 = vmatpush1.bf16.msra.mxu0 0
    %1483 = vmatprep.subr.bf16.mxu0 0
    %1484 = vmatpush1.bf16.msra.mxu0 0
    %1485 = vmatprep.subr.bf16.mxu0 0
    %1486 = vmatpush1.bf16.msra.mxu0 0
    %1487 = vmatprep.subr.bf16.mxu0 0
    %1488 = vmatpush1.bf16.msra.mxu0 0
    %1489 = vmatprep.subr.bf16.mxu0 0
    %1490 = vmatpush1.bf16.msra.mxu0 0
    %1491 = vmatprep.mubr.bf16.mxu0 0
    %1492 = vmatmul.mubr.bf16.gmra.mrb[0].mxu0 %v1334
    %v1493 = vpop.f32.mrb[0].mxu0
    %v1494 = vadd.f32 %v1453, %v1493
    %v1495 = vpop.f32.mrb[0].mxu0
    %v1496 = vadd.f32 %v1455, %v1495
    %v1497 = vpop.f32.mrb[0].mxu0
    %v1498 = vpop.f32.mrb[0].mxu0
    %1499 = vdwg.mxu0
    %1500 = vmatprep.subr.bf16.mxu0 %v943
    %1501 = vmatpush1.bf16.msra.mxu0 %v942
    %1502 = vmatprep.subr.bf16.mxu0 %v947
    %1503 = vmatpush1.bf16.msra.mxu0 %v946
    %1504 = vmatprep.subr.bf16.mxu0 %v951
    %1505 = vmatpush1.bf16.msra.mxu0 %v950
    %1506 = vmatprep.subr.bf16.mxu0 %v955
    %1507 = vmatpush1.bf16.msra.mxu0 %v954
    %1508 = vmatprep.subr.bf16.mxu0 %v959
    %1509 = vmatpush1.bf16.msra.mxu0 %v958
    %1510 = vmatprep.subr.bf16.mxu0 %v963
    %1511 = vmatpush1.bf16.msra.mxu0 %v962
    %1512 = vmatprep.subr.bf16.mxu0 %v967
    %1513 = vmatpush1.bf16.msra.mxu0 %v966
    %1514 = vmatprep.subr.bf16.mxu0 %v971
    %1515 = vmatpush1.bf16.msra.mxu0 %v970
    %1516 = vmatprep.subr.bf16.mxu0 %v975
    %1517 = vmatpush1.bf16.msra.mxu0 %v974
    %1518 = vmatprep.subr.bf16.mxu0 %v979
    %1519 = vmatpush1.bf16.msra.mxu0 %v978
    %1520 = vmatprep.subr.bf16.mxu0 %v983
    %1521 = vmatpush1.bf16.msra.mxu0 %v982
    %1522 = vmatprep.subr.bf16.mxu0 %v987
    %1523 = vmatpush1.bf16.msra.mxu0 %v986
    %1524 = vmatprep.subr.bf16.mxu0 %v991
    %1525 = vmatpush1.bf16.msra.mxu0 %v990
    %1526 = vmatprep.subr.bf16.mxu0 %v995
    %1527 = vmatpush1.bf16.msra.mxu0 %v994
    %1528 = vmatprep.subr.bf16.mxu0 %v999
    %1529 = vmatpush1.bf16.msra.mxu0 %v998
    %1530 = vmatprep.subr.bf16.mxu0 %v1003
    %1531 = vmatpush1.bf16.msra.mxu0 %v1002
    %1532 = vmatprep.mubr.bf16.mxu0 %v128
    %1533 = vmatmul.mubr.bf16.gmra.mrb[0].mxu0 %v127
    %v1534 = vpop.f32.mrb[0].mxu0
    %v1535 = vadd.f32 %v343, %v1534
    %v1536 = vpop.f32.mrb[0].mxu0
    %v1537 = vadd.f32 %v347, %v1536
    %v1538 = vpop.f32.mrb[0].mxu0
    %v1539 = vpop.f32.mrb[0].mxu0
    %1540 = vdwg.mxu0
    %1541 = vmatprep.subr.bf16.mxu0 %v1007
    %1542 = vmatpush1.bf16.msra.mxu0 %v1006
    %1543 = vmatprep.subr.bf16.mxu0 %v1011
    %1544 = vmatpush1.bf16.msra.mxu0 %v1010
    %1545 = vmatprep.subr.bf16.mxu0 %v1015
    %1546 = vmatpush1.bf16.msra.mxu0 %v1014
    %1547 = vmatprep.subr.bf16.mxu0 %v1019
    %1548 = vmatpush1.bf16.msra.mxu0 %v1018
    %1549 = vmatprep.subr.bf16.mxu0 %v1023
    %1550 = vmatpush1.bf16.msra.mxu0 %v1022
    %1551 = vmatprep.subr.bf16.mxu0 %v1027
    %1552 = vmatpush1.bf16.msra.mxu0 %v1026
    %1553 = vmatprep.subr.bf16.mxu0 %v1031
    %1554 = vmatpush1.bf16.msra.mxu0 %v1030
    %1555 = vmatprep.subr.bf16.mxu0 %v1035
    %1556 = vmatpush1.bf16.msra.mxu0 %v1034
    %1557 = vmatprep.subr.bf16.mxu0 %v1039
    %1558 = vmatpush1.bf16.msra.mxu0 %v1038
    %1559 = vmatprep.subr.bf16.mxu0 %v1043
    %1560 = vmatpush1.bf16.msra.mxu0 %v1042
    %1561 = vmatprep.subr.bf16.mxu0 %v1047
    %1562 = vmatpush1.bf16.msra.mxu0 %v1046
    %1563 = vmatprep.subr.bf16.mxu0 %v1051
    %1564 = vmatpush1.bf16.msra.mxu0 %v1050
    %1565 = vmatprep.subr.bf16.mxu0 %v1055
    %1566 = vmatpush1.bf16.msra.mxu0 %v1054
    %1567 = vmatprep.subr.bf16.mxu0 %v1059
    %1568 = vmatpush1.bf16.msra.mxu0 %v1058
    %1569 = vmatprep.subr.bf16.mxu0 %v1063
    %1570 = vmatpush1.bf16.msra.mxu0 %v1062
    %1571 = vmatprep.subr.bf16.mxu0 %v1067
    %1572 = vmatpush1.bf16.msra.mxu0 %v1066
    %1573 = vmatprep.mubr.bf16.mxu0 %v130
    %1574 = vmatmul.mubr.bf16.gmra.mrb[0].mxu0 %v129
    %v1575 = vpop.f32.mrb[0].mxu0
    %v1576 = vadd.f32 %v1535, %v1575
    %v1577 = vpop.f32.mrb[0].mxu0
    %v1578 = vadd.f32 %v1537, %v1577
    %v1579 = vpop.f32.mrb[0].mxu0
    %v1580 = vpop.f32.mrb[0].mxu0
    %1581 = vdwg.mxu0
    %1582 = vmatprep.subr.bf16.mxu0 %v1071
    %1583 = vmatpush1.bf16.msra.mxu0 %v1070
    %1584 = vmatprep.subr.bf16.mxu0 %v1075
    %1585 = vmatpush1.bf16.msra.mxu0 %v1074
    %1586 = vmatprep.subr.bf16.mxu0 %v1079
    %1587 = vmatpush1.bf16.msra.mxu0 %v1078
    %1588 = vmatprep.subr.bf16.mxu0 %v1083
    %1589 = vmatpush1.bf16.msra.mxu0 %v1082
    %1590 = vmatprep.subr.bf16.mxu0 %v1087
    %1591 = vmatpush1.bf16.msra.mxu0 %v1086
    %1592 = vmatprep.subr.bf16.mxu0 %v1091
    %1593 = vmatpush1.bf16.msra.mxu0 %v1090
    %1594 = vmatprep.subr.bf16.mxu0 %v1095
    %1595 = vmatpush1.bf16.msra.mxu0 %v1094
    %1596 = vmatprep.subr.bf16.mxu0 %v1099
    %1597 = vmatpush1.bf16.msra.mxu0 %v1098
    %1598 = vmatprep.subr.bf16.mxu0 %v1103
    %1599 = vmatpush1.bf16.msra.mxu0 %v1102
    %1600 = vmatprep.subr.bf16.mxu0 %v1107
    %1601 = vmatpush1.bf16.msra.mxu0 %v1106
    %1602 = vmatprep.subr.bf16.mxu0 %v1111
    %1603 = vmatpush1.bf16.msra.mxu0 %v1110
    %1604 = vmatprep.subr.bf16.mxu0 %v1115
    %1605 = vmatpush1.bf16.msra.mxu0 %v1114
    %1606 = vmatprep.subr.bf16.mxu0 %v1119
    %1607 = vmatpush1.bf16.msra.mxu0 %v1118
    %1608 = vmatprep.subr.bf16.mxu0 %v1123
    %1609 = vmatpush1.bf16.msra.mxu0 %v1122
    %1610 = vmatprep.subr.bf16.mxu0 %v1127
    %1611 = vmatpush1.bf16.msra.mxu0 %v1126
    %1612 = vmatprep.subr.bf16.mxu0 %v1131
    %1613 = vmatpush1.bf16.msra.mxu0 %v1130
    %1614 = vmatprep.mubr.bf16.mxu0 %v132
    %1615 = vmatmul.mubr.bf16.gmra.mrb[0].mxu0 %v131
    %v1616 = vpop.f32.mrb[0].mxu0
    %v1617 = vadd.f32 %v1576, %v1616
    %v1618 = vpop.f32.mrb[0].mxu0
    %v1619 = vadd.f32 %v1578, %v1618
    %v1620 = vpop.f32.mrb[0].mxu0
    %v1621 = vpop.f32.mrb[0].mxu0
    %1622 = vdwg.mxu0
    %1623 = vmatprep.subr.bf16.mxu0 %v1135
    %1624 = vmatpush1.bf16.msra.mxu0 %v1134
    %1625 = vmatprep.subr.bf16.mxu0 0
    %1626 = vmatpush1.bf16.msra.mxu0 0
    %1627 = vmatprep.subr.bf16.mxu0 0
    %1628 = vmatpush1.bf16.msra.mxu0 0
    %1629 = vmatprep.subr.bf16.mxu0 0
    %1630 = vmatpush1.bf16.msra.mxu0 0
    %1631 = vmatprep.subr.bf16.mxu0 0
    %1632 = vmatpush1.bf16.msra.mxu0 0
    %1633 = vmatprep.subr.bf16.mxu0 0
    %1634 = vmatpush1.bf16.msra.mxu0 0
    %1635 = vmatprep.subr.bf16.mxu0 0
    %1636 = vmatpush1.bf16.msra.mxu0 0
    %1637 = vmatprep.subr.bf16.mxu0 0
    %1638 = vmatpush1.bf16.msra.mxu0 0
    %1639 = vmatprep.subr.bf16.mxu0 0
    %1640 = vmatpush1.bf16.msra.mxu0 0
    %1641 = vmatprep.subr.bf16.mxu0 0
    %1642 = vmatpush1.bf16.msra.mxu0 0
    %1643 = vmatprep.subr.bf16.mxu0 0
    %1644 = vmatpush1.bf16.msra.mxu0 0
    %1645 = vmatprep.subr.bf16.mxu0 0
    %1646 = vmatpush1.bf16.msra.mxu0 0
    %1647 = vmatprep.subr.bf16.mxu0 0
    %1648 = vmatpush1.bf16.msra.mxu0 0
    %1649 = vmatprep.subr.bf16.mxu0 0
    %1650 = vmatpush1.bf16.msra.mxu0 0
    %1651 = vmatprep.subr.bf16.mxu0 0
    %1652 = vmatpush1.bf16.msra.mxu0 0
    %1653 = vmatprep.subr.bf16.mxu0 0
    %1654 = vmatpush1.bf16.msra.mxu0 0
    %1655 = vmatprep.mubr.bf16.mxu0 0
    %1656 = vmatmul.mubr.bf16.gmra.mrb[0].mxu0 %v1334
    %v1657 = vpop.f32.mrb[0].mxu0
    %v1658 = vadd.f32 %v1617, %v1657
    %v1659 = vpop.f32.mrb[0].mxu0
    %v1660 = vadd.f32 %v1619, %v1659
    %v1661 = vpop.f32.mrb[0].mxu0
    %v1662 = vpop.f32.mrb[0].mxu0
    %1663 = vdwg.mxu0
    %v1664 = vmax.f32 %v1494, 0.0
    %v1665 = vmax.f32 %v1496, 0.0
    %v1666 = vmax.f32 %v1658, 0.0
    %v1667 = vmax.f32 %v1660, 0.0
    %v1668 = vpack.c.bf16 %v1664, %v1664
    %v1669 = vpack.c.bf16 %v1665, %v1665
    %v1670 = vpack.c.bf16 %v1666, %v1666
    %v1671 = vpack.c.bf16 %v1667, %v1667
    %v1672 = vld [vmem:[#allocation7] sm:$0xff]
    %v1673 = vld [vmem:[#allocation7 + $0x8] sm:$0xff]
    %v1674 = vld [vmem:[#allocation7 + $0x10] sm:$0xff]
    %v1675 = vld [vmem:[#allocation7 + $0x18] sm:$0xff]
    %v1676 = vld [vmem:[#allocation7 + $0x20] sm:$0xff]
    %v1677 = vld [vmem:[#allocation7 + $0x28] sm:$0xff]
    %v1678 = vld [vmem:[#allocation7 + $0x30] sm:$0xff]
    %v1679 = vld [vmem:[#allocation7 + $0x38] sm:$0xff]
    %v1680 = vld [vmem:[#allocation7 + $0x40] sm:$0xff]
    %v1681 = vld [vmem:[#allocation7 + $0x48] sm:$0xff]
    %v1682 = vld [vmem:[#allocation7 + $0x50] sm:$0xff]
    %v1683 = vld [vmem:[#allocation7 + $0x58] sm:$0xff]
    %v1684 = vld [vmem:[#allocation7 + $0x60] sm:$0xff]
    %v1685 = vld [vmem:[#allocation7 + $0x68] sm:$0xff]
    %v1686 = vld [vmem:[#allocation7 + $0x70] sm:$0xff]
    %v1687 = vld [vmem:[#allocation7 + $0x78] sm:$0xff]
    %v1688 = vld [vmem:[#allocation7 + $0x80] sm:$0xff]
    %v1689 = vld [vmem:[#allocation7 + $0x88] sm:$0xff]
    %v1690 = vld [vmem:[#allocation7 + $0x90] sm:$0xff]
    %v1691 = vld [vmem:[#allocation7 + $0x98] sm:$0xff]
    %v1692 = vld [vmem:[#allocation7 + $0xa0] sm:$0xff]
    %v1693 = vld [vmem:[#allocation7 + $0xa8] sm:$0xff]
    %v1694 = vld [vmem:[#allocation7 + $0xb0] sm:$0xff]
    %v1695 = vld [vmem:[#allocation7 + $0xb8] sm:$0xff]
    %v1696 = vld [vmem:[#allocation7 + $0xc0] sm:$0xff]
    %v1697 = vld [vmem:[#allocation7 + $0xc8] sm:$0xff]
    %v1698 = vld [vmem:[#allocation7 + $0xd0] sm:$0xff]
    %v1699 = vld [vmem:[#allocation7 + $0xd8] sm:$0xff]
    %v1700 = vld [vmem:[#allocation7 + $0xe0] sm:$0xff]
    %v1701 = vld [vmem:[#allocation7 + $0xe8] sm:$0xff]
    %v1702 = vld [vmem:[#allocation7 + $0xf0] sm:$0xff]
    %v1703 = vld [vmem:[#allocation7 + $0xf8] sm:$0xff]
    %v1704 = vld [vmem:[#allocation7 + $0x100] sm:$0xff]
    %v1705 = vld [vmem:[#allocation7 + $0x108] sm:$0xff]
    %v1706 = vld [vmem:[#allocation7 + $0x110] sm:$0xff]
    %v1707 = vld [vmem:[#allocation7 + $0x118] sm:$0xff]
    %v1708 = vld [vmem:[#allocation7 + $0x120] sm:$0xff]
    %v1709 = vld [vmem:[#allocation7 + $0x128] sm:$0xff]
    %v1710 = vld [vmem:[#allocation7 + $0x130] sm:$0xff]
    %v1711 = vld [vmem:[#allocation7 + $0x138] sm:$0xff]
    %v1712 = vld [vmem:[#allocation7 + $0x140] sm:$0xff]
    %v1713 = vld [vmem:[#allocation7 + $0x148] sm:$0xff]
    %v1714 = vld [vmem:[#allocation7 + $0x150] sm:$0xff]
    %v1715 = vld [vmem:[#allocation7 + $0x158] sm:$0xff]
    %v1716 = vld [vmem:[#allocation7 + $0x160] sm:$0xff]
    %v1717 = vld [vmem:[#allocation7 + $0x168] sm:$0xff]
    %v1718 = vld [vmem:[#allocation7 + $0x170] sm:$0xff]
    %v1719 = vld [vmem:[#allocation7 + $0x178] sm:$0xff]
    %v1720 = vld [vmem:[#allocation7 + $0x180] sm:$0xff]
    %v1721 = vld [vmem:[#allocation7 + $0x188] sm:$0xff]
    %v1722 = vld [vmem:[#allocation7 + $0x190] sm:$0xff]
    %v1723 = vld [vmem:[#allocation7 + $0x198] sm:$0xff]
    %v1724 = vld [vmem:[#allocation7 + $0x1a0] sm:$0xff]
    %v1725 = vld [vmem:[#allocation7 + $0x1a8] sm:$0xff]
    %v1726 = vld [vmem:[#allocation7 + $0x1b0] sm:$0xff]
    %v1727 = vld [vmem:[#allocation7 + $0x1b8] sm:$0xff]
    %v1728 = vld [vmem:[#allocation7 + $0x1c0] sm:$0xff]
    %v1729 = vld [vmem:[#allocation7 + $0x1c8] sm:$0xff]
    %v1730 = vld [vmem:[#allocation7 + $0x1d0] sm:$0xff]
    %v1731 = vld [vmem:[#allocation7 + $0x1d8] sm:$0xff]
    %v1732 = vld [vmem:[#allocation7 + $0x1e0] sm:$0xff]
    %v1733 = vld [vmem:[#allocation7 + $0x1e8] sm:$0xff]
    %v1734 = vld [vmem:[#allocation7 + $0x1f0] sm:$0xff]
    %v1735 = vld [vmem:[#allocation7 + $0x1f8] sm:$0xff]
    %v1736 = vld [vmem:[%s4] sm:$0x3]
    %v1738 = vlaneseq
    %v1739 = vshrl.u32 %v1738, 7
    %v1740 = vsub.s32 0, %v1739
    %v1741 = vrot.slane %v1736, %v1740
    %v1742 = vlaneseq
    %v1743 = vshrl.u32 %v1742, 7
    %v1744 = vsub.s32 1, %v1743
    %v1745 = vrot.slane %v1736, %v1744
    %v1812 = vunpack.c.l.b16 %v1672
    %v1813 = vunpack.c.h.b16 %v1672
    %v1814 = vunpack.c.l.b16 %v1673
    %v1815 = vunpack.c.h.b16 %v1673
    %v1816 = vunpack.c.l.b16 %v1674
    %v1817 = vunpack.c.h.b16 %v1674
    %v1818 = vunpack.c.l.b16 %v1675
    %v1819 = vunpack.c.h.b16 %v1675
    %v1820 = vunpack.c.l.b16 %v1676
    %v1821 = vunpack.c.h.b16 %v1676
    %v1822 = vunpack.c.l.b16 %v1677
    %v1823 = vunpack.c.h.b16 %v1677
    %v1824 = vunpack.c.l.b16 %v1678
    %v1825 = vunpack.c.h.b16 %v1678
    %v1826 = vunpack.c.l.b16 %v1679
    %v1827 = vunpack.c.h.b16 %v1679
    %v1828 = vunpack.c.l.b16 %v1680
    %v1829 = vunpack.c.h.b16 %v1680
    %v1830 = vunpack.c.l.b16 %v1681
    %v1831 = vunpack.c.h.b16 %v1681
    %v1832 = vunpack.c.l.b16 %v1682
    %v1833 = vunpack.c.h.b16 %v1682
    %v1834 = vunpack.c.l.b16 %v1683
    %v1835 = vunpack.c.h.b16 %v1683
    %v1836 = vunpack.c.l.b16 %v1684
    %v1837 = vunpack.c.h.b16 %v1684
    %v1838 = vunpack.c.l.b16 %v1685
    %v1839 = vunpack.c.h.b16 %v1685
    %v1840 = vunpack.c.l.b16 %v1686
    %v1841 = vunpack.c.h.b16 %v1686
    %v1842 = vunpack.c.l.b16 %v1687
    %v1843 = vunpack.c.h.b16 %v1687
    %v1844 = vunpack.c.l.b16 %v1688
    %v1845 = vunpack.c.h.b16 %v1688
    %v1846 = vunpack.c.l.b16 %v1689
    %v1847 = vunpack.c.h.b16 %v1689
    %v1848 = vunpack.c.l.b16 %v1690
    %v1849 = vunpack.c.h.b16 %v1690
    %v1850 = vunpack.c.l.b16 %v1691
    %v1851 = vunpack.c.h.b16 %v1691
    %v1852 = vunpack.c.l.b16 %v1692
    %v1853 = vunpack.c.h.b16 %v1692
    %v1854 = vunpack.c.l.b16 %v1693
    %v1855 = vunpack.c.h.b16 %v1693
    %v1856 = vunpack.c.l.b16 %v1694
    %v1857 = vunpack.c.h.b16 %v1694
    %v1858 = vunpack.c.l.b16 %v1695
    %v1859 = vunpack.c.h.b16 %v1695
    %v1860 = vunpack.c.l.b16 %v1696
    %v1861 = vunpack.c.h.b16 %v1696
    %v1862 = vunpack.c.l.b16 %v1697
    %v1863 = vunpack.c.h.b16 %v1697
    %v1864 = vunpack.c.l.b16 %v1698
    %v1865 = vunpack.c.h.b16 %v1698
    %v1866 = vunpack.c.l.b16 %v1699
    %v1867 = vunpack.c.h.b16 %v1699
    %v1868 = vunpack.c.l.b16 %v1700
    %v1869 = vunpack.c.h.b16 %v1700
    %v1870 = vunpack.c.l.b16 %v1701
    %v1871 = vunpack.c.h.b16 %v1701
    %v1872 = vunpack.c.l.b16 %v1702
    %v1873 = vunpack.c.h.b16 %v1702
    %v1874 = vunpack.c.l.b16 %v1703
    %v1875 = vunpack.c.h.b16 %v1703
    %v1876 = vunpack.c.l.b16 %v1704
    %v1877 = vunpack.c.h.b16 %v1704
    %v1878 = vunpack.c.l.b16 %v1705
    %v1879 = vunpack.c.h.b16 %v1705
    %v1880 = vunpack.c.l.b16 %v1706
    %v1881 = vunpack.c.h.b16 %v1706
    %v1882 = vunpack.c.l.b16 %v1707
    %v1883 = vunpack.c.h.b16 %v1707
    %v1884 = vunpack.c.l.b16 %v1708
    %v1885 = vunpack.c.h.b16 %v1708
    %v1886 = vunpack.c.l.b16 %v1709
    %v1887 = vunpack.c.h.b16 %v1709
    %v1888 = vunpack.c.l.b16 %v1710
    %v1889 = vunpack.c.h.b16 %v1710
    %v1890 = vunpack.c.l.b16 %v1711
    %v1891 = vunpack.c.h.b16 %v1711
    %v1892 = vunpack.c.l.b16 %v1712
    %v1893 = vunpack.c.h.b16 %v1712
    %v1894 = vunpack.c.l.b16 %v1713
    %v1895 = vunpack.c.h.b16 %v1713
    %v1896 = vunpack.c.l.b16 %v1714
    %v1897 = vunpack.c.h.b16 %v1714
    %v1898 = vunpack.c.l.b16 %v1715
    %v1899 = vunpack.c.h.b16 %v1715
    %v1900 = vunpack.c.l.b16 %v1716
    %v1901 = vunpack.c.h.b16 %v1716
    %v1902 = vunpack.c.l.b16 %v1717
    %v1903 = vunpack.c.h.b16 %v1717
    %v1904 = vunpack.c.l.b16 %v1718
    %v1905 = vunpack.c.h.b16 %v1718
    %v1906 = vunpack.c.l.b16 %v1719
    %v1907 = vunpack.c.h.b16 %v1719
    %v1908 = vunpack.c.l.b16 %v1720
    %v1909 = vunpack.c.h.b16 %v1720
    %v1910 = vunpack.c.l.b16 %v1721
    %v1911 = vunpack.c.h.b16 %v1721
    %v1912 = vunpack.c.l.b16 %v1722
    %v1913 = vunpack.c.h.b16 %v1722
    %v1914 = vunpack.c.l.b16 %v1723
    %v1915 = vunpack.c.h.b16 %v1723
    %v1916 = vunpack.c.l.b16 %v1724
    %v1917 = vunpack.c.h.b16 %v1724
    %v1918 = vunpack.c.l.b16 %v1725
    %v1919 = vunpack.c.h.b16 %v1725
    %v1920 = vunpack.c.l.b16 %v1726
    %v1921 = vunpack.c.h.b16 %v1726
    %v1922 = vunpack.c.l.b16 %v1727
    %v1923 = vunpack.c.h.b16 %v1727
    %v1924 = vunpack.c.l.b16 %v1728
    %v1925 = vunpack.c.h.b16 %v1728
    %v1926 = vunpack.c.l.b16 %v1729
    %v1927 = vunpack.c.h.b16 %v1729
    %v1928 = vunpack.c.l.b16 %v1730
    %v1929 = vunpack.c.h.b16 %v1730
    %v1930 = vunpack.c.l.b16 %v1731
    %v1931 = vunpack.c.h.b16 %v1731
    %v1932 = vunpack.c.l.b16 %v1732
    %v1933 = vunpack.c.h.b16 %v1732
    %v1934 = vunpack.c.l.b16 %v1733
    %v1935 = vunpack.c.h.b16 %v1733
    %v1936 = vunpack.c.l.b16 %v1734
    %v1937 = vunpack.c.h.b16 %v1734
    %v1938 = vunpack.c.l.b16 %v1735
    %v1939 = vunpack.c.h.b16 %v1735
    %v1940 = vpack.c.b16 %v1814, %v1812
    %v1941 = vpack.c.b16 %v1815, %v1813
    %v1942 = vpack.c.b16 %v1818, %v1816
    %v1943 = vpack.c.b16 %v1819, %v1817
    %v1944 = vpack.c.b16 %v1822, %v1820
    %v1945 = vpack.c.b16 %v1823, %v1821
    %v1946 = vpack.c.b16 %v1826, %v1824
    %v1947 = vpack.c.b16 %v1827, %v1825
    %v1948 = vpack.c.b16 %v1830, %v1828
    %v1949 = vpack.c.b16 %v1831, %v1829
    %v1950 = vpack.c.b16 %v1834, %v1832
    %v1951 = vpack.c.b16 %v1835, %v1833
    %v1952 = vpack.c.b16 %v1838, %v1836
    %v1953 = vpack.c.b16 %v1839, %v1837
    %v1954 = vpack.c.b16 %v1842, %v1840
    %v1955 = vpack.c.b16 %v1843, %v1841
    %v1956 = vpack.c.b16 %v1846, %v1844
    %v1957 = vpack.c.b16 %v1847, %v1845
    %v1958 = vpack.c.b16 %v1850, %v1848
    %v1959 = vpack.c.b16 %v1851, %v1849
    %v1960 = vpack.c.b16 %v1854, %v1852
    %v1961 = vpack.c.b16 %v1855, %v1853
    %v1962 = vpack.c.b16 %v1858, %v1856
    %v1963 = vpack.c.b16 %v1859, %v1857
    %v1964 = vpack.c.b16 %v1862, %v1860
    %v1965 = vpack.c.b16 %v1863, %v1861
    %v1966 = vpack.c.b16 %v1866, %v1864
    %v1967 = vpack.c.b16 %v1867, %v1865
    %v1968 = vpack.c.b16 %v1870, %v1868
    %v1969 = vpack.c.b16 %v1871, %v1869
    %v1970 = vpack.c.b16 %v1874, %v1872
    %v1971 = vpack.c.b16 %v1875, %v1873
    %v1972 = vpack.c.b16 %v1878, %v1876
    %v1973 = vpack.c.b16 %v1879, %v1877
    %v1974 = vpack.c.b16 %v1882, %v1880
    %v1975 = vpack.c.b16 %v1883, %v1881
    %v1976 = vpack.c.b16 %v1886, %v1884
    %v1977 = vpack.c.b16 %v1887, %v1885
    %v1978 = vpack.c.b16 %v1890, %v1888
    %v1979 = vpack.c.b16 %v1891, %v1889
    %v1980 = vpack.c.b16 %v1894, %v1892
    %v1981 = vpack.c.b16 %v1895, %v1893
    %v1982 = vpack.c.b16 %v1898, %v1896
    %v1983 = vpack.c.b16 %v1899, %v1897
    %v1984 = vpack.c.b16 %v1902, %v1900
    %v1985 = vpack.c.b16 %v1903, %v1901
    %v1986 = vpack.c.b16 %v1906, %v1904
    %v1987 = vpack.c.b16 %v1907, %v1905
    %v1988 = vpack.c.b16 %v1910, %v1908
    %v1989 = vpack.c.b16 %v1911, %v1909
    %v1990 = vpack.c.b16 %v1914, %v1912
    %v1991 = vpack.c.b16 %v1915, %v1913
    %v1992 = vpack.c.b16 %v1918, %v1916
    %v1993 = vpack.c.b16 %v1919, %v1917
    %v1994 = vpack.c.b16 %v1922, %v1920
    %v1995 = vpack.c.b16 %v1923, %v1921
    %v1996 = vpack.c.b16 %v1926, %v1924
    %v1997 = vpack.c.b16 %v1927, %v1925
    %v1998 = vpack.c.b16 %v1930, %v1928
    %v1999 = vpack.c.b16 %v1931, %v1929
    %v2000 = vpack.c.b16 %v1934, %v1932
    %v2001 = vpack.c.b16 %v1935, %v1933
    %v2002 = vpack.c.b16 %v1938, %v1936
    %v2003 = vpack.c.b16 %v1939, %v1937
    %2068 = vmatprep.subr.bf16.mxu0 %v1941
    %2069 = vmatpush1.bf16.msra.mxu0 %v1940
    %2070 = vmatprep.subr.bf16.mxu0 %v1943
    %2071 = vmatpush1.bf16.msra.mxu0 %v1942
    %2072 = vmatprep.subr.bf16.mxu0 %v1945
    %2073 = vmatpush1.bf16.msra.mxu0 %v1944
    %2074 = vmatprep.subr.bf16.mxu0 %v1947
    %2075 = vmatpush1.bf16.msra.mxu0 %v1946
    %2076 = vmatprep.subr.bf16.mxu0 %v1949
    %2077 = vmatpush1.bf16.msra.mxu0 %v1948
    %2078 = vmatprep.subr.bf16.mxu0 %v1951
    %2079 = vmatpush1.bf16.msra.mxu0 %v1950
    %2080 = vmatprep.subr.bf16.mxu0 %v1953
    %2081 = vmatpush1.bf16.msra.mxu0 %v1952
    %2082 = vmatprep.subr.bf16.mxu0 %v1955
    %2083 = vmatpush1.bf16.msra.mxu0 %v1954
    %2084 = vmatprep.subr.bf16.mxu0 %v1957
    %2085 = vmatpush1.bf16.msra.mxu0 %v1956
    %2086 = vmatprep.subr.bf16.mxu0 %v1959
    %2087 = vmatpush1.bf16.msra.mxu0 %v1958
    %2088 = vmatprep.subr.bf16.mxu0 %v1961
    %2089 = vmatpush1.bf16.msra.mxu0 %v1960
    %2090 = vmatprep.subr.bf16.mxu0 %v1963
    %2091 = vmatpush1.bf16.msra.mxu0 %v1962
    %2092 = vmatprep.subr.bf16.mxu0 %v1965
    %2093 = vmatpush1.bf16.msra.mxu0 %v1964
    %2094 = vmatprep.subr.bf16.mxu0 %v1967
    %2095 = vmatpush1.bf16.msra.mxu0 %v1966
    %2096 = vmatprep.subr.bf16.mxu0 %v1969
    %2097 = vmatpush1.bf16.msra.mxu0 %v1968
    %2098 = vmatprep.subr.bf16.mxu0 %v1971
    %2099 = vmatpush1.bf16.msra.mxu0 %v1970
    %2100 = vmatprep.mubr.bf16.mxu0 %v1669
    %2101 = vmatmul.mubr.bf16.gmra.mrb[0].mxu0 %v1668
    %v2102 = vpop.f32.mrb[0].mxu0
    %v2103 = vadd.f32 %v1741, %v2102
    %v2104 = vpop.f32.mrb[0].mxu0
    %v2105 = vadd.f32 %v1745, %v2104
    %v2106 = vpop.f32.mrb[0].mxu0
    %v2107 = vpop.f32.mrb[0].mxu0
    %2108 = vdwg.mxu0
    %2109 = vmatprep.subr.bf16.mxu0 %v1973
    %2110 = vmatpush1.bf16.msra.mxu0 %v1972
    %2111 = vmatprep.subr.bf16.mxu0 %v1975
    %2112 = vmatpush1.bf16.msra.mxu0 %v1974
    %2113 = vmatprep.subr.bf16.mxu0 %v1977
    %2114 = vmatpush1.bf16.msra.mxu0 %v1976
    %2115 = vmatprep.subr.bf16.mxu0 %v1979
    %2116 = vmatpush1.bf16.msra.mxu0 %v1978
    %2117 = vmatprep.subr.bf16.mxu0 %v1981
    %2118 = vmatpush1.bf16.msra.mxu0 %v1980
    %2119 = vmatprep.subr.bf16.mxu0 %v1983
    %2120 = vmatpush1.bf16.msra.mxu0 %v1982
    %2121 = vmatprep.subr.bf16.mxu0 %v1985
    %2122 = vmatpush1.bf16.msra.mxu0 %v1984
    %2123 = vmatprep.subr.bf16.mxu0 %v1987
    %2124 = vmatpush1.bf16.msra.mxu0 %v1986
    %2125 = vmatprep.subr.bf16.mxu0 %v1989
    %2126 = vmatpush1.bf16.msra.mxu0 %v1988
    %2127 = vmatprep.subr.bf16.mxu0 %v1991
    %2128 = vmatpush1.bf16.msra.mxu0 %v1990
    %2129 = vmatprep.subr.bf16.mxu0 %v1993
    %2130 = vmatpush1.bf16.msra.mxu0 %v1992
    %2131 = vmatprep.subr.bf16.mxu0 %v1995
    %2132 = vmatpush1.bf16.msra.mxu0 %v1994
    %2133 = vmatprep.subr.bf16.mxu0 %v1997
    %2134 = vmatpush1.bf16.msra.mxu0 %v1996
    %2135 = vmatprep.subr.bf16.mxu0 %v1999
    %2136 = vmatpush1.bf16.msra.mxu0 %v1998
    %2137 = vmatprep.subr.bf16.mxu0 %v2001
    %2138 = vmatpush1.bf16.msra.mxu0 %v2000
    %2139 = vmatprep.subr.bf16.mxu0 %v2003
    %2140 = vmatpush1.bf16.msra.mxu0 %v2002
    %2141 = vmatprep.mubr.bf16.mxu0 %v1671
    %2142 = vmatmul.mubr.bf16.gmra.mrb[0].mxu0 %v1670
    %v2143 = vpop.f32.mrb[0].mxu0
    %v2144 = vadd.f32 %v2103, %v2143
    %v2145 = vpop.f32.mrb[0].mxu0
    %v2146 = vadd.f32 %v2105, %v2145
    %v2147 = vpop.f32.mrb[0].mxu0
    %v2148 = vpop.f32.mrb[0].mxu0
    %2149 = vdwg.mxu0
    %v2150 = vmax.f32 %v2144, 0.0
    %v2151 = vmax.f32 %v2146, 0.0
    %v2152 = vpack.c.bf16 %v2150, %v2150
    %v2153 = vpack.c.bf16 %v2151, %v2151
    %v2154 = vld [vmem:[#allocation8] sm:$0xf]
    %v2155 = vld [vmem:[#allocation8 + $0x4] sm:$0xf]
    %v2156 = vld [vmem:[#allocation8 + $0x8] sm:$0xf]
    %v2157 = vld [vmem:[#allocation8 + $0xc] sm:$0xf]
    %v2158 = vld [vmem:[#allocation8 + $0x10] sm:$0xf]
    %v2159 = vld [vmem:[#allocation8 + $0x14] sm:$0xf]
    %v2160 = vld [vmem:[#allocation8 + $0x18] sm:$0xf]
    %v2161 = vld [vmem:[#allocation8 + $0x1c] sm:$0xf]
    %v2162 = vld [vmem:[#allocation8 + $0x20] sm:$0xf]
    %v2163 = vld [vmem:[#allocation8 + $0x24] sm:$0xf]
    %v2164 = vld [vmem:[#allocation8 + $0x28] sm:$0xf]
    %v2165 = vld [vmem:[#allocation8 + $0x2c] sm:$0xf]
    %v2166 = vld [vmem:[#allocation8 + $0x30] sm:$0xf]
    %v2167 = vld [vmem:[#allocation8 + $0x34] sm:$0xf]
    %v2168 = vld [vmem:[#allocation8 + $0x38] sm:$0xf]
    %v2169 = vld [vmem:[#allocation8 + $0x3c] sm:$0xf]
    %v2170 = vld [vmem:[#allocation8 + $0x40] sm:$0xf]
    %v2171 = vld [vmem:[#allocation8 + $0x44] sm:$0xf]
    %v2172 = vld [vmem:[#allocation8 + $0x48] sm:$0xf]
    %v2173 = vld [vmem:[#allocation8 + $0x4c] sm:$0xf]
    %v2174 = vld [vmem:[#allocation8 + $0x50] sm:$0xf]
    %v2175 = vld [vmem:[#allocation8 + $0x54] sm:$0xf]
    %v2176 = vld [vmem:[#allocation8 + $0x58] sm:$0xf]
    %v2177 = vld [vmem:[#allocation8 + $0x5c] sm:$0xf]
    %v2178 = vld [vmem:[#allocation8 + $0x60] sm:$0xf]
    %v2179 = vld [vmem:[#allocation8 + $0x64] sm:$0xf]
    %v2180 = vld [vmem:[#allocation8 + $0x68] sm:$0xf]
    %v2181 = vld [vmem:[#allocation8 + $0x6c] sm:$0xf]
    %v2182 = vld [vmem:[#allocation8 + $0x70] sm:$0xf]
    %v2183 = vld [vmem:[#allocation8 + $0x74] sm:$0xf]
    %v2184 = vld [vmem:[#allocation8 + $0x78] sm:$0xf]
    %v2185 = vld [vmem:[#allocation8 + $0x7c] sm:$0xf]
    %v2186 = vld [vmem:[%s6] sm:$0x1]
    %v2188 = vlaneseq
    %v2189 = vshrl.u32 %v2188, 7
    %v2190 = vsub.s32 0, %v2189
    %v2191 = vrot.slane %v2186, %v2190
    %v2225 = vunpack.c.l.b16 %v2154
    %v2226 = vunpack.c.l.b16 %v2155
    %v2227 = vunpack.c.l.b16 %v2156
    %v2228 = vunpack.c.l.b16 %v2157
    %v2229 = vunpack.c.l.b16 %v2158
    %v2230 = vunpack.c.l.b16 %v2159
    %v2231 = vunpack.c.l.b16 %v2160
    %v2232 = vunpack.c.l.b16 %v2161
    %v2233 = vunpack.c.l.b16 %v2162
    %v2234 = vunpack.c.l.b16 %v2163
    %v2235 = vunpack.c.l.b16 %v2164
    %v2236 = vunpack.c.l.b16 %v2165
    %v2237 = vunpack.c.l.b16 %v2166
    %v2238 = vunpack.c.l.b16 %v2167
    %v2239 = vunpack.c.l.b16 %v2168
    %v2240 = vunpack.c.l.b16 %v2169
    %v2241 = vunpack.c.l.b16 %v2170
    %v2242 = vunpack.c.l.b16 %v2171
    %v2243 = vunpack.c.l.b16 %v2172
    %v2244 = vunpack.c.l.b16 %v2173
    %v2245 = vunpack.c.l.b16 %v2174
    %v2246 = vunpack.c.l.b16 %v2175
    %v2247 = vunpack.c.l.b16 %v2176
    %v2248 = vunpack.c.l.b16 %v2177
    %v2249 = vunpack.c.l.b16 %v2178
    %v2250 = vunpack.c.l.b16 %v2179
    %v2251 = vunpack.c.l.b16 %v2180
    %v2252 = vunpack.c.l.b16 %v2181
    %v2253 = vunpack.c.l.b16 %v2182
    %v2254 = vunpack.c.l.b16 %v2183
    %v2255 = vunpack.c.l.b16 %v2184
    %v2256 = vunpack.c.l.b16 %v2185
    %v2257 = vpack.c.b16 %v2226, %v2225
    %v2258 = vpack.c.b16 %v2228, %v2227
    %v2259 = vpack.c.b16 %v2230, %v2229
    %v2260 = vpack.c.b16 %v2232, %v2231
    %v2261 = vpack.c.b16 %v2234, %v2233
    %v2262 = vpack.c.b16 %v2236, %v2235
    %v2263 = vpack.c.b16 %v2238, %v2237
    %v2264 = vpack.c.b16 %v2240, %v2239
    %v2265 = vpack.c.b16 %v2242, %v2241
    %v2266 = vpack.c.b16 %v2244, %v2243
    %v2267 = vpack.c.b16 %v2246, %v2245
    %v2268 = vpack.c.b16 %v2248, %v2247
    %v2269 = vpack.c.b16 %v2250, %v2249
    %v2270 = vpack.c.b16 %v2252, %v2251
    %v2271 = vpack.c.b16 %v2254, %v2253
    %v2272 = vpack.c.b16 %v2256, %v2255
    %2289 = vmatprep.subr.bf16.mxu0 0
    %2290 = vmatpush1.bf16.msra.mxu0 %v2257
    %2291 = vmatprep.subr.bf16.mxu0 0
    %2292 = vmatpush1.bf16.msra.mxu0 %v2258
    %2293 = vmatprep.subr.bf16.mxu0 0
    %2294 = vmatpush1.bf16.msra.mxu0 %v2259
    %2295 = vmatprep.subr.bf16.mxu0 0
    %2296 = vmatpush1.bf16.msra.mxu0 %v2260
    %2297 = vmatprep.subr.bf16.mxu0 0
    %2298 = vmatpush1.bf16.msra.mxu0 %v2261
    %2299 = vmatprep.subr.bf16.mxu0 0
    %2300 = vmatpush1.bf16.msra.mxu0 %v2262
    %2301 = vmatprep.subr.bf16.mxu0 0
    %2302 = vmatpush1.bf16.msra.mxu0 %v2263
    %2303 = vmatprep.subr.bf16.mxu0 0
    %2304 = vmatpush1.bf16.msra.mxu0 %v2264
    %2305 = vmatprep.subr.bf16.mxu0 0
    %2306 = vmatpush1.bf16.msra.mxu0 %v2265
    %2307 = vmatprep.subr.bf16.mxu0 0
    %2308 = vmatpush1.bf16.msra.mxu0 %v2266
    %2309 = vmatprep.subr.bf16.mxu0 0
    %2310 = vmatpush1.bf16.msra.mxu0 %v2267
    %2311 = vmatprep.subr.bf16.mxu0 0
    %2312 = vmatpush1.bf16.msra.mxu0 %v2268
    %2313 = vmatprep.subr.bf16.mxu0 0
    %2314 = vmatpush1.bf16.msra.mxu0 %v2269
    %2315 = vmatprep.subr.bf16.mxu0 0
    %2316 = vmatpush1.bf16.msra.mxu0 %v2270
    %2317 = vmatprep.subr.bf16.mxu0 0
    %2318 = vmatpush1.bf16.msra.mxu0 %v2271
    %2319 = vmatprep.subr.bf16.mxu0 0
    %2320 = vmatpush1.bf16.msra.mxu0 %v2272
    %2321 = vmatprep.mubr.bf16.mxu0 %v2153
    %2322 = vmatmul.mubr.bf16.gmra.mrb[0].mxu0 %v2152
    %v2323 = vpop.f32.mrb[0].mxu0
    %v2324 = vadd.f32 %v2191, %v2323
    %v2325 = vpop.f32.mrb[0].mxu0
    %v2326 = vpop.f32.mrb[0].mxu0
    %v2327 = vpop.f32.mrb[0].mxu0
    %2328 = vdwg.mxu0
    %v2329 = vmax.f32 %v2324, 0.0
    %v2330 = vpack.c.bf16 %v2329, %v2329
    %v2331 = vld [vmem:[#allocation10] sm:$0xf]
    %v2332 = vld [vmem:[#allocation10 + $0x4] sm:$0xf]
    %v2333 = vld [vmem:[#allocation10 + $0x8] sm:$0xf]
    %v2334 = vld [vmem:[#allocation10 + $0xc] sm:$0xf]
    %v2335 = vld [vmem:[#allocation10 + $0x10] sm:$0xf]
    %v2336 = vld [vmem:[#allocation10 + $0x14] sm:$0xf]
    %v2337 = vld [vmem:[#allocation10 + $0x18] sm:$0xf]
    %v2338 = vld [vmem:[#allocation10 + $0x1c] sm:$0xf]
    %v2339 = vld [vmem:[#allocation10 + $0x20] sm:$0xf]
    %v2340 = vld [vmem:[#allocation10 + $0x24] sm:$0xf]
    %v2341 = vld [vmem:[#allocation10 + $0x28] sm:$0xf]
    %v2342 = vld [vmem:[#allocation10 + $0x2c] sm:$0xf]
    %v2343 = vld [vmem:[#allocation10 + $0x30] sm:$0xf]
    %v2344 = vld [vmem:[#allocation10 + $0x34] sm:$0xf]
    %v2345 = vld [vmem:[#allocation10 + $0x38] sm:$0xf]
    %v2346 = vld [vmem:[#allocation10 + $0x3c] sm:$0xf]
    %v2347 = vld [vmem:[%s8] sm:$0x1]
    %v2349 = vlaneseq
    %v2350 = vshrl.u32 %v2349, 7
    %v2351 = vsub.s32 0, %v2350
    %v2352 = vrot.slane %v2347, %v2351
    %v2370 = vunpack.c.l.b16 %v2331
    %v2371 = vunpack.c.l.b16 %v2332
    %v2372 = vunpack.c.l.b16 %v2333
    %v2373 = vunpack.c.l.b16 %v2334
    %v2374 = vunpack.c.l.b16 %v2335
    %v2375 = vunpack.c.l.b16 %v2336
    %v2376 = vunpack.c.l.b16 %v2337
    %v2377 = vunpack.c.l.b16 %v2338
    %v2378 = vunpack.c.l.b16 %v2339
    %v2379 = vunpack.c.l.b16 %v2340
    %v2380 = vunpack.c.l.b16 %v2341
    %v2381 = vunpack.c.l.b16 %v2342
    %v2382 = vunpack.c.l.b16 %v2343
    %v2383 = vunpack.c.l.b16 %v2344
    %v2384 = vunpack.c.l.b16 %v2345
    %v2385 = vunpack.c.l.b16 %v2346
    %v2386 = vpack.c.b16 %v2371, %v2370
    %v2387 = vpack.c.b16 %v2373, %v2372
    %v2388 = vpack.c.b16 %v2375, %v2374
    %v2389 = vpack.c.b16 %v2377, %v2376
    %v2390 = vpack.c.b16 %v2379, %v2378
    %v2391 = vpack.c.b16 %v2381, %v2380
    %v2392 = vpack.c.b16 %v2383, %v2382
    %v2393 = vpack.c.b16 %v2385, %v2384
    %2402 = vmatprep.subr.bf16.mxu0 0
    %2403 = vmatpush1.bf16.msra.mxu0 %v2386
    %2404 = vmatprep.subr.bf16.mxu0 0
    %2405 = vmatpush1.bf16.msra.mxu0 %v2387
    %2406 = vmatprep.subr.bf16.mxu0 0
    %2407 = vmatpush1.bf16.msra.mxu0 %v2388
    %2408 = vmatprep.subr.bf16.mxu0 0
    %2409 = vmatpush1.bf16.msra.mxu0 %v2389
    %2410 = vmatprep.subr.bf16.mxu0 0
    %2411 = vmatpush1.bf16.msra.mxu0 %v2390
    %2412 = vmatprep.subr.bf16.mxu0 0
    %2413 = vmatpush1.bf16.msra.mxu0 %v2391
    %2414 = vmatprep.subr.bf16.mxu0 0
    %2415 = vmatpush1.bf16.msra.mxu0 %v2392
    %2416 = vmatprep.subr.bf16.mxu0 0
    %2417 = vmatpush1.bf16.msra.mxu0 %v2393
    %2418 = vmatprep.subr.bf16.mxu0 0
    %2419 = vmatpush1.bf16.msra.mxu0 0
    %2420 = vmatprep.subr.bf16.mxu0 0
    %2421 = vmatpush1.bf16.msra.mxu0 0
    %2422 = vmatprep.subr.bf16.mxu0 0
    %2423 = vmatpush1.bf16.msra.mxu0 0
    %2424 = vmatprep.subr.bf16.mxu0 0
    %2425 = vmatpush1.bf16.msra.mxu0 0
    %2426 = vmatprep.subr.bf16.mxu0 0
    %2427 = vmatpush1.bf16.msra.mxu0 0
    %2428 = vmatprep.subr.bf16.mxu0 0
    %2429 = vmatpush1.bf16.msra.mxu0 0
    %2430 = vmatprep.subr.bf16.mxu0 0
    %2431 = vmatpush1.bf16.msra.mxu0 0
    %2432 = vmatprep.subr.bf16.mxu0 0
    %2433 = vmatpush1.bf16.msra.mxu0 0
    %2434 = vmatprep.mubr.bf16.mxu0 0
    %2435 = vmatmul.mubr.bf16.gmra.mrb[0].mxu0 %v2330
    %v2436 = vpop.f32.mrb[0].mxu0
    %v2437 = vadd.f32 %v2352, %v2436
    %v2438 = vpop.f32.mrb[0].mxu0
    %v2439 = vpop.f32.mrb[0].mxu0
    %v2440 = vpop.f32.mrb[0].mxu0
    %2441 = vdwg.mxu0
    %v2442 = vmax.f32 %v2437, 0.0
    %v2443 = vpack.c.bf16 %v2442, %v2442
    %v2444 = vld [vmem:[#allocation11] sm:$0xf]
    %v2445 = vld [vmem:[#allocation11 + $0x4] sm:$0xf]
    %v2446 = vld [vmem:[#allocation11 + $0x8] sm:$0xf]
    %v2447 = vld [vmem:[#allocation11 + $0xc] sm:$0xf]
    %v2448 = vld [vmem:[#allocation11 + $0x10] sm:$0xf]
    %v2449 = vld [vmem:[#allocation11 + $0x14] sm:$0xf]
    %v2450 = vld [vmem:[#allocation11 + $0x18] sm:$0xf]
    %v2451 = vld [vmem:[#allocation11 + $0x1c] sm:$0xf]
    %v2452 = vld [vmem:[#allocation11 + $0x20] sm:$0xf]
    %v2453 = vld [vmem:[#allocation11 + $0x24] sm:$0xf]
    %v2454 = vld [vmem:[#allocation11 + $0x28] sm:$0xf]
    %v2455 = vld [vmem:[#allocation11 + $0x2c] sm:$0xf]
    %v2456 = vld [vmem:[#allocation11 + $0x30] sm:$0xf]
    %v2457 = vld [vmem:[#allocation11 + $0x34] sm:$0xf]
    %v2458 = vld [vmem:[#allocation11 + $0x38] sm:$0xf]
    %v2459 = vld [vmem:[#allocation11 + $0x3c] sm:$0xf]
    %v2460 = vld [vmem:[%s10] sm:$0x1]
    %v2462 = vlaneseq
    %v2463 = vshrl.u32 %v2462, 7
    %v2464 = vsub.s32 0, %v2463
    %v2465 = vrot.slane %v2460, %v2464
    %v2483 = vunpack.c.l.b16 %v2444
    %v2484 = vunpack.c.l.b16 %v2445
    %v2485 = vunpack.c.l.b16 %v2446
    %v2486 = vunpack.c.l.b16 %v2447
    %v2487 = vunpack.c.l.b16 %v2448
    %v2488 = vunpack.c.l.b16 %v2449
    %v2489 = vunpack.c.l.b16 %v2450
    %v2490 = vunpack.c.l.b16 %v2451
    %v2491 = vunpack.c.l.b16 %v2452
    %v2492 = vunpack.c.l.b16 %v2453
    %v2493 = vunpack.c.l.b16 %v2454
    %v2494 = vunpack.c.l.b16 %v2455
    %v2495 = vunpack.c.l.b16 %v2456
    %v2496 = vunpack.c.l.b16 %v2457
    %v2497 = vunpack.c.l.b16 %v2458
    %v2498 = vunpack.c.l.b16 %v2459
    %v2499 = vpack.c.b16 %v2484, %v2483
    %v2500 = vpack.c.b16 %v2486, %v2485
    %v2501 = vpack.c.b16 %v2488, %v2487
    %v2502 = vpack.c.b16 %v2490, %v2489
    %v2503 = vpack.c.b16 %v2492, %v2491
    %v2504 = vpack.c.b16 %v2494, %v2493
    %v2505 = vpack.c.b16 %v2496, %v2495
    %v2506 = vpack.c.b16 %v2498, %v2497
    %2515 = vmatprep.subr.bf16.mxu0 0
    %2516 = vmatpush1.bf16.msra.mxu0 %v2499
    %2517 = vmatprep.subr.bf16.mxu0 0
    %2518 = vmatpush1.bf16.msra.mxu0 %v2500
    %2519 = vmatprep.subr.bf16.mxu0 0
    %2520 = vmatpush1.bf16.msra.mxu0 %v2501
    %2521 = vmatprep.subr.bf16.mxu0 0
    %2522 = vmatpush1.bf16.msra.mxu0 %v2502
    %2523 = vmatprep.subr.bf16.mxu0 0
    %2524 = vmatpush1.bf16.msra.mxu0 %v2503
    %2525 = vmatprep.subr.bf16.mxu0 0
    %2526 = vmatpush1.bf16.msra.mxu0 %v2504
    %2527 = vmatprep.subr.bf16.mxu0 0
    %2528 = vmatpush1.bf16.msra.mxu0 %v2505
    %2529 = vmatprep.subr.bf16.mxu0 0
    %2530 = vmatpush1.bf16.msra.mxu0 %v2506
    %2531 = vmatprep.subr.bf16.mxu0 0
    %2532 = vmatpush1.bf16.msra.mxu0 0
    %2533 = vmatprep.subr.bf16.mxu0 0
    %2534 = vmatpush1.bf16.msra.mxu0 0
    %2535 = vmatprep.subr.bf16.mxu0 0
    %2536 = vmatpush1.bf16.msra.mxu0 0
    %2537 = vmatprep.subr.bf16.mxu0 0
    %2538 = vmatpush1.bf16.msra.mxu0 0
    %2539 = vmatprep.subr.bf16.mxu0 0
    %2540 = vmatpush1.bf16.msra.mxu0 0
    %2541 = vmatprep.subr.bf16.mxu0 0
    %2542 = vmatpush1.bf16.msra.mxu0 0
    %2543 = vmatprep.subr.bf16.mxu0 0
    %2544 = vmatpush1.bf16.msra.mxu0 0
    %2545 = vmatprep.subr.bf16.mxu0 0
    %2546 = vmatpush1.bf16.msra.mxu0 0
    %2547 = vmatprep.mubr.bf16.mxu0 0
    %2548 = vmatmul.mubr.bf16.gmra.mrb[0].mxu0 %v2443
    %v2549 = vpop.f32.mrb[0].mxu0
    %v2550 = vadd.f32 %v2465, %v2549
    %v2551 = vpop.f32.mrb[0].mxu0
    %v2552 = vpop.f32.mrb[0].mxu0
    %v2553 = vpop.f32.mrb[0].mxu0
    %2554 = vdwg.mxu0
    %2555 = vmax.xlane.f32.xlu0 %v2550
    %v2556 = vpop.xlane.xlu0 %2555
    %v2557 = vsub.f32 %v2550, %v2556
    %v2558 = vmul.f32 %v2557, 1.442695
    %v2559 = vpow.pop %v2558
    %2560 = vadd.xlane.f32.xlu0 %v2559
    %v2561 = vpop.xlane.xlu0 %2560
    %v2562 = vlog2.pop %v2561
    %v2563 = vmul.f32 %v2562, 0.6931472
    %v2564 = vsub.f32 %v2557, %v2563
    %v2565 = vpack.c.bf16 %v2564, %v2564
    %2566 = vst [vmem:[#allocation13] sm:$0xf] %v2565
    // Predicated region
    $region70: #{tpu_custom_call.1} parent=1 // pred_check
      _
    $region71: #{tpu_custom_call.1} parent=1 // pred_check_branch
      %2568 = sbr.rel (0) target = $region73
    $region72: #{tpu_custom_call.1} parent=1 // pred_region
      %s2570 = ssub.s32 64, 64
      %2571 = vsyncadd [#allocation4], %s2570
      %s2573 = sshll.u32 [#allocation13], 4
      %s2574 = int_to_ptr.vmem [resolvable:$true] %s2573
      %2576 = dma.vmem_to_hbm [thread:$0]  %s2574, 64, %s11, [#allocation4]
    $region73: #{tpu_custom_call.1} parent=1 // pred_fallthru
      _
    // Predicated region
    $region74: #{tpu_custom_call.1} parent=1 // pred_check
      _
    $region75: #{tpu_custom_call.1} parent=1 // pred_check_branch
      %2578 = sbr.rel (0) target = $region77
    $region76: #{tpu_custom_call.1} parent=1 // pred_region
      %2579 = dma.done [#allocation4], 64
    $region77: #{tpu_custom_call.1} parent=1 // pred_fallthru
      _
    %2580 = vsyncpa [#allocation3], 1
    %2581 = vsyncpa [#allocation6], 1
    %2582 = vsyncpa [#allocation9], 1
    %2583 = vsyncpa [#allocation12], 1
    %2584 = vsyncpa [#allocation4], 1

</llo_original>
